<compile_context>
chip_gen: v6e
topology: v6e:2x2x1
jax: 0.10.0
libtpu: 0.0.40
codegen_flags: <defaults>
</compile_context>

<pallas_src>
import math

import jax
import jax.numpy as jnp
from jax import lax
from jax.experimental import pallas as pl
from jax.experimental.pallas import tpu as pltpu


def _make_kernel(num_heads, batch):
    nh = num_heads
    B = batch

    def kernel(vl_ref,                                  # SMEM (B,) int32 (scalar prefetch)
               x_ref, enc_ref,                          # VMEM (S,H) / (Se,H) per-batch blocks
               wqkv1_ref, wo1_ref,                      # (H,3H) bf16, (H,H) bf16
               wq2_ref, wkv2_ref, wo2_ref,              # (H,H), (H,2H), (H,H) bf16
               g1_ref, b1_ref, g2_ref, b2_ref, g3_ref, b3_ref,   # (1,H) f32 each
               wf1_ref, bf1_ref, wf2_ref, bf2_ref,      # (H,F) bf16,(1,F) f32,(F,H) bf16,(1,H) f32
               o_ref):                                  # VMEM (S,H) f32
        f32 = jnp.float32
        bf16 = jnp.bfloat16
        S, H = x_ref.shape
        Se = enc_ref.shape[0]
        dh = H // nh
        b = pl.program_id(0)

        def layer_norm(t, g_r, be_r):
            mu = jnp.mean(t, axis=-1, keepdims=True)
            tc = t - mu
            var = jnp.mean(tc * tc, axis=-1, keepdims=True)
            return tc * lax.rsqrt(var + 1e-5) * g_r[...] + be_r[...]

        def attention(q, k, v, wo_r, masks):
            # q: (Sq,H) f32, k/v: (Skv,H) f32, wo_r: (H,H) bf16 ref
            heads = []
            for h in range(nh):
                sl = slice(h * dh, (h + 1) * dh)
                # scores: contract last dims directly (no materialized transpose);
                # 1/sqrt(dh) already folded into W_q host-side.
                s = lax.dot_general(q[:, sl].astype(bf16), k[:, sl].astype(bf16),
                                    (((1,), (1,)), ((), ())),
                                    preferred_element_type=f32)        # (Sq, Skv)
                if masks is not None:
                    s = jnp.where(masks[h], s, f32(-1e6))
                # manual softmax in f32; reciprocal on the EUP
                m = jnp.max(s, axis=-1, keepdims=True)
                p = jnp.exp(s - m)
                p = p * pl.reciprocal(jnp.sum(p, axis=-1, keepdims=True), approx=True)
                heads.append(jnp.dot(p.astype(bf16), v[:, sl].astype(bf16),
                                     preferred_element_type=f32))       # (Sq, dh)
            cat = jnp.concatenate(heads, axis=-1)                        # (Sq, H)
            return jnp.dot(cat.astype(bf16), wo_r[...], preferred_element_type=f32)

        x = x_ref[...]                                                   # (S, H) f32
        enc = enc_ref[...]                                               # (Se, H) f32

        # --- self attention (eval: valid_len is None -> unmasked), add & norm
        qkv1 = jnp.dot(x.astype(bf16), wqkv1_ref[...], preferred_element_type=f32)
        att1 = attention(qkv1[:, 0:H], qkv1[:, H:2 * H], qkv1[:, 2 * H:3 * H],
                         wo1_ref, None)
        y = layer_norm(att1 + x, g1_ref, b1_ref)

        # --- cross attention with encoder outputs (masked), add & norm
        q2 = jnp.dot(y.astype(bf16), wq2_ref[...], preferred_element_type=f32)
        kv2 = jnp.dot(enc.astype(bf16), wkv2_ref[...], preferred_element_type=f32)
        col = lax.broadcasted_iota(jnp.int32, (S, Se), 1)
        # torch `valid_len.repeat(num_heads)` (tile): flat index b*nh+h -> vl[(b*nh+h)%B]
        masks = [col < vl_ref[(b * nh + h) % B] for h in range(nh)]
        att2 = attention(q2, kv2[:, 0:H], kv2[:, H:2 * H], wo2_ref, masks)
        z = layer_norm(att2 + y, g2_ref, b2_ref)

        # --- position-wise FFN, add & norm
        hid = jnp.dot(z.astype(bf16), wf1_ref[...], preferred_element_type=f32)
        hid = jnp.maximum(hid + bf1_ref[...], 0.0)
        f = jnp.dot(hid.astype(bf16), wf2_ref[...], preferred_element_type=f32)
        f = f + bf2_ref[...]
        out = layer_norm(f + z, g3_ref, b3_ref)

        o_ref[...] = out.astype(o_ref.dtype)

    return kernel


def decoder_block_forward(x, enc_outputs, enc_valid_len, params, num_heads):
    """x: (B,S,H); enc_outputs: (B,Se,H); enc_valid_len: (B,) int; params: dict."""
    B, S, H = x.shape
    Se = enc_outputs.shape[1]
    dh = H // num_heads
    F = params["w_ffn1"].shape[1]
    bf16 = jnp.bfloat16
    scale = 1.0 / math.sqrt(dh)

    # Host-side layout plumbing:
    #  * fold 1/sqrt(dh) into W_q
    #  * fuse Q/K/V (resp. K/V) projections into one lane-dense slab
    #  * cast all MXU weights to bf16 (f32 accumulation in-kernel)
    wqkv1 = jnp.concatenate([params["wq1"] * scale, params["wk1"], params["wv1"]],
                            axis=1).astype(bf16)                 # (H, 3H)
    wq2 = (params["wq2"] * scale).astype(bf16)                   # (H, H)
    wkv2 = jnp.concatenate([params["wk2"], params["wv2"]], axis=1).astype(bf16)  # (H, 2H)
    wo1 = params["wo1"].astype(bf16)
    wo2 = params["wo2"].astype(bf16)
    wf1 = params["w_ffn1"].astype(bf16)
    wf2 = params["w_ffn2"].astype(bf16)

    weights = (
        wqkv1, wo1, wq2, wkv2, wo2,
        params["g1"].reshape(1, H), params["b1"].reshape(1, H),
        params["g2"].reshape(1, H), params["b2"].reshape(1, H),
        params["g3"].reshape(1, H), params["b3"].reshape(1, H),
        wf1, params["b_ffn1"].reshape(1, F),
        wf2, params["b_ffn2"].reshape(1, H),
    )

    # Per-batch blocks for x / enc / out; weights stay resident (constant index map).
    in_specs = (
        [pl.BlockSpec((None, S, H), lambda b, vl: (b, 0, 0)),
         pl.BlockSpec((None, Se, H), lambda b, vl: (b, 0, 0))]
        + [pl.BlockSpec(w.shape, lambda b, vl: (0, 0)) for w in weights]
    )
    out_spec = pl.BlockSpec((None, S, H), lambda b, vl: (b, 0, 0))

    grid_spec = pltpu.PrefetchScalarGridSpec(
        num_scalar_prefetch=1,
        grid=(B,),
        in_specs=in_specs,
        out_specs=out_spec,
    )

    # Explicit VMEM budget: double-buffered per-batch blocks + resident weights + slack.
    block_bytes = (2 * S * H + Se * H) * 4
    weight_bytes = sum(int(w.size) * w.dtype.itemsize for w in weights)
    vmem_limit = int(min(max(4 * (block_bytes + weight_bytes) + (4 << 20), 16 << 20),
                         64 << 20))

    nh = num_heads
    flops = B * (
        2 * S * H * 3 * H                           # fused QKV projection (attn 1)
        + 2 * S * H * H + 2 * Se * H * 2 * H        # Q / fused KV projections (attn 2)
        + nh * (4 * S * S * dh + 4 * S * Se * dh)   # scores + weights@V, both attns
        + 2 * S * H * H * 2                         # two W_o projections
        + 2 * S * H * F * 2                         # FFN
    )
    transcendentals = B * (nh * (S * S + S * Se) + 6 * S)
    bytes_accessed = (int(x.size) + int(enc_outputs.size) + B * S * H) * 4 \
        + weight_bytes + int(enc_valid_len.size) * 4

    return pl.pallas_call(
        _make_kernel(num_heads, B),
        out_shape=jax.ShapeDtypeStruct((B, S, H), jnp.float32),
        grid_spec=grid_spec,
        compiler_params=pltpu.CompilerParams(
            dimension_semantics=("parallel",),
            vmem_limit_bytes=vmem_limit),
        cost_estimate=pl.CostEstimate(flops=flops,
                                      transcendentals=transcendentals,
                                      bytes_accessed=bytes_accessed),
    )(enc_valid_len.astype(jnp.int32), x, enc_outputs, *weights)


# ----------------------------------------------------------------------------
# Pure-JAX replica of the PyTorch forward (for verification).
# ----------------------------------------------------------------------------
def decoder_block_reference(x, enc_outputs, enc_valid_len, params, num_heads):
    def mha_ref(q_in, kv_in, wq, wk, wv, wo, valid_len):
        B, Sq, _ = q_in.shape
        H = wq.shape[1]
        dh = H // num_heads

        def split(t):  # transpose_qkv
            t = t.reshape(B, -1, num_heads, dh).transpose(0, 2, 1, 3)
            return t.reshape(B * num_heads, -1, dh)

        q = split(q_in @ wq)
        k = split(kv_in @ wk)
        v = split(kv_in @ wv)
        scores = jnp.einsum("bqd,bkd->bqk", q, k) / math.sqrt(dh)
        if valid_len is not None:
            vl = jnp.tile(valid_len, num_heads)          # torch .repeat == tile
            col = lax.broadcasted_iota(jnp.int32, scores.shape, 2)
            scores = jnp.where(col < vl[:, None, None], scores, -1e6)
        w = jax.nn.softmax(scores, axis=-1)
        o = jnp.einsum("bqk,bkd->bqd", w, v)
        o = o.reshape(B, num_heads, Sq, dh).transpose(0, 2, 1, 3).reshape(B, Sq, H)
        return o @ wo                                     # transpose_output + W_o

    def ln_ref(t, g, b):
        mu = t.mean(-1, keepdims=True)
        var = ((t - mu) ** 2).mean(-1, keepdims=True)
        return (t - mu) / jnp.sqrt(var + 1e-5) * g + b

    X2 = mha_ref(x, x, params["wq1"], params["wk1"], params["wv1"], params["wo1"], None)
    Y = ln_ref(X2 + x, params["g1"], params["b1"])
    Y2 = mha_ref(Y, enc_outputs,
                 params["wq2"], params["wk2"], params["wv2"], params["wo2"],
                 enc_valid_len)
    Z = ln_ref(Y2 + Y, params["g2"], params["b2"])
    Fh = jnp.maximum(Z @ params["w_ffn1"] + params["b_ffn1"], 0.0)
    Fo = Fh @ params["w_ffn2"] + params["b_ffn2"]
    return ln_ref(Fo + Z, params["g3"], params["b3"])


if __name__ == "__main__":
    # small shapes consistent with the module (residual requires feature == num_hiddens)
    batch, seq, enc_seq = 2, 8, 8
    num_hiddens, num_heads = 32, 4
    ffn_num_hiddens = 64
    # dropout = 0 / eval mode -> identity in the kernel

    root = jax.random.PRNGKey(0)
    ks = jax.random.split(root, 20)

    def linear_w(k, fan_in, fan_out):
        bound = 1.0 / math.sqrt(fan_in)
        return jax.random.uniform(k, (fan_in, fan_out), jnp.float32, -bound, bound)

    def linear_b(k, fan_in, fan_out):
        bound = 1.0 / math.sqrt(fan_in)
        return jax.random.uniform(k, (fan_out,), jnp.float32, -bound, bound)

    H, F = num_hiddens, ffn_num_hiddens
    params = {
        # attention 1 (self) — no bias
        "wq1": linear_w(ks[0], H, H), "wk1": linear_w(ks[1], H, H),
        "wv1": linear_w(ks[2], H, H), "wo1": linear_w(ks[3], H, H),
        # attention 2 (cross) — no bias
        "wq2": linear_w(ks[4], H, H), "wk2": linear_w(ks[5], H, H),
        "wv2": linear_w(ks[6], H, H), "wo2": linear_w(ks[7], H, H),
        # layer norms (randomized to exercise parameter plumbing)
        "g1": 1.0 + 0.1 * jax.random.normal(ks[8], (H,), jnp.float32),
        "b1": 0.1 * jax.random.normal(ks[9], (H,), jnp.float32),
        "g2": 1.0 + 0.1 * jax.random.normal(ks[10], (H,), jnp.float32),
        "b2": 0.1 * jax.random.normal(ks[11], (H,), jnp.float32),
        "g3": 1.0 + 0.1 * jax.random.normal(ks[12], (H,), jnp.float32),
        "b3": 0.1 * jax.random.normal(ks[13], (H,), jnp.float32),
        # position-wise FFN (with bias, like nn.Linear defaults)
        "w_ffn1": linear_w(ks[14], H, F), "b_ffn1": linear_b(ks[15], H, F),
        "w_ffn2": linear_w(ks[16], F, H), "b_ffn2": linear_b(ks[17], F, H),
    }

    x = jax.random.normal(ks[18], (batch, seq, H), jnp.float32)
    enc_outputs = jax.random.normal(ks[19], (batch, enc_seq, H), jnp.float32)
    enc_valid_len = jnp.array([2, 3], dtype=jnp.int32)

    out = decoder_block_forward(x, enc_outputs, enc_valid_len, params, num_heads)
    out = jax.block_until_ready(out)

    ref = decoder_block_reference(x, enc_outputs, enc_valid_len, params, num_heads)
    assert out.shape == (batch, seq, H)
    # bf16 MXU operands + approx softmax reciprocal loosen tolerance vs the f32 reference
    assert jnp.allclose(out, ref, atol=3e-2, rtol=3e-2), float(jnp.max(jnp.abs(out - ref)))

    print("KERNEL_OK")
</pallas_src>

<mosaic_0001>
module attributes {stable_mosaic.version = 11 : i64} {
  func.func @kernel(%arg0: i32, %arg1: memref<2xi32, #tpu.memory_space<smem>>, %arg2: memref<1x8x32xf32, #tpu.memory_space<vmem>>, %arg3: memref<1x8x32xf32, #tpu.memory_space<vmem>>, %arg4: memref<32x96xbf16, #tpu.memory_space<vmem>>, %arg5: memref<32x32xbf16, #tpu.memory_space<vmem>>, %arg6: memref<32x32xbf16, #tpu.memory_space<vmem>>, %arg7: memref<32x64xbf16, #tpu.memory_space<vmem>>, %arg8: memref<32x32xbf16, #tpu.memory_space<vmem>>, %arg9: memref<1x32xf32, #tpu.memory_space<vmem>>, %arg10: memref<1x32xf32, #tpu.memory_space<vmem>>, %arg11: memref<1x32xf32, #tpu.memory_space<vmem>>, %arg12: memref<1x32xf32, #tpu.memory_space<vmem>>, %arg13: memref<1x32xf32, #tpu.memory_space<vmem>>, %arg14: memref<1x32xf32, #tpu.memory_space<vmem>>, %arg15: memref<32x64xbf16, #tpu.memory_space<vmem>>, %arg16: memref<1x64xf32, #tpu.memory_space<vmem>>, %arg17: memref<64x32xbf16, #tpu.memory_space<vmem>>, %arg18: memref<1x32xf32, #tpu.memory_space<vmem>>, %arg19: memref<1x8x32xf32, #tpu.memory_space<vmem>>) attributes {dimension_semantics = [#tpu.dimension_semantics<parallel>], iteration_bounds = array<i64: 2>, scalar_prefetch = 1 : i64, scratch_operands = 0 : i64, tpu.core_type = #tpu.core_type<tc>, window_params = [{transform_indices = @transform_0, window_bounds = array<i64: 1, 8, 32>}, {transform_indices = @transform_1, window_bounds = array<i64: 1, 8, 32>}, {pipeline_mode = #tpu.pipeline_mode<synchronous>, transform_indices = @transform_2, window_bounds = array<i64: 32, 96>}, {pipeline_mode = #tpu.pipeline_mode<synchronous>, transform_indices = @transform_3, window_bounds = array<i64: 32, 32>}, {pipeline_mode = #tpu.pipeline_mode<synchronous>, transform_indices = @transform_4, window_bounds = array<i64: 32, 32>}, {pipeline_mode = #tpu.pipeline_mode<synchronous>, transform_indices = @transform_5, window_bounds = array<i64: 32, 64>}, {pipeline_mode = #tpu.pipeline_mode<synchronous>, transform_indices = @transform_6, window_bounds = array<i64: 32, 32>}, {pipeline_mode = #tpu.pipeline_mode<synchronous>, transform_indices = @transform_7, window_bounds = array<i64: 1, 32>}, {pipeline_mode = #tpu.pipeline_mode<synchronous>, transform_indices = @transform_8, window_bounds = array<i64: 1, 32>}, {pipeline_mode = #tpu.pipeline_mode<synchronous>, transform_indices = @transform_9, window_bounds = array<i64: 1, 32>}, {pipeline_mode = #tpu.pipeline_mode<synchronous>, transform_indices = @transform_10, window_bounds = array<i64: 1, 32>}, {pipeline_mode = #tpu.pipeline_mode<synchronous>, transform_indices = @transform_11, window_bounds = array<i64: 1, 32>}, {pipeline_mode = #tpu.pipeline_mode<synchronous>, transform_indices = @transform_12, window_bounds = array<i64: 1, 32>}, {pipeline_mode = #tpu.pipeline_mode<synchronous>, transform_indices = @transform_13, window_bounds = array<i64: 32, 64>}, {pipeline_mode = #tpu.pipeline_mode<synchronous>, transform_indices = @transform_14, window_bounds = array<i64: 1, 64>}, {pipeline_mode = #tpu.pipeline_mode<synchronous>, transform_indices = @transform_15, window_bounds = array<i64: 64, 32>}, {pipeline_mode = #tpu.pipeline_mode<synchronous>, transform_indices = @transform_16, window_bounds = array<i64: 1, 32>}, {transform_indices = @transform_17, window_bounds = array<i64: 1, 8, 32>}]} {
    %c0 = arith.constant 0 : index
    %c0_0 = arith.constant 0 : index
    %c0_1 = arith.constant 0 : index
    %0 = vector.load %arg2[%c0, %c0_0, %c0_1] : memref<1x8x32xf32, #tpu.memory_space<vmem>>, vector<1x8x32xf32>
    %1 = vector.shape_cast %0 : vector<1x8x32xf32> to vector<8x32xf32>
    %c0_2 = arith.constant 0 : index
    %c0_3 = arith.constant 0 : index
    %c0_4 = arith.constant 0 : index
    %2 = vector.load %arg3[%c0_2, %c0_3, %c0_4] : memref<1x8x32xf32, #tpu.memory_space<vmem>>, vector<1x8x32xf32>
    %3 = vector.shape_cast %2 : vector<1x8x32xf32> to vector<8x32xf32>
    %4 = arith.truncf %1 : vector<8x32xf32> to vector<8x32xbf16>
    %c0_5 = arith.constant 0 : index
    %c0_6 = arith.constant 0 : index
    %5 = vector.load %arg4[%c0_5, %c0_6] : memref<32x96xbf16, #tpu.memory_space<vmem>>, vector<32x96xbf16>
    %cst = arith.constant dense<0.000000e+00> : vector<8x96xf32>
    %6 = tpu.matmul %4, %5, %cst {dimension_numbers = #tpu.dot_dimension_numbers<[1], [0], [0], [1], [0, 0, 1, 1], [], []>} : vector<8x32xbf16>, vector<32x96xbf16>, vector<8x96xf32> -> vector<8x96xf32>
    %7 = vector.extract_strided_slice %6 {offsets = [0, 0], sizes = [8, 32], strides = [1, 1]} : vector<8x96xf32> to vector<8x32xf32>
    %8 = vector.extract_strided_slice %6 {offsets = [0, 32], sizes = [8, 32], strides = [1, 1]} : vector<8x96xf32> to vector<8x32xf32>
    %9 = vector.extract_strided_slice %6 {offsets = [0, 64], sizes = [8, 32], strides = [1, 1]} : vector<8x96xf32> to vector<8x32xf32>
    %10 = vector.extract_strided_slice %7 {offsets = [0, 0], sizes = [8, 8], strides = [1, 1]} : vector<8x32xf32> to vector<8x8xf32>
    %11 = arith.truncf %10 : vector<8x8xf32> to vector<8x8xbf16>
    %12 = vector.extract_strided_slice %8 {offsets = [0, 0], sizes = [8, 8], strides = [1, 1]} : vector<8x32xf32> to vector<8x8xf32>
    %13 = arith.truncf %12 : vector<8x8xf32> to vector<8x8xbf16>
    %cst_7 = arith.constant dense<0.000000e+00> : vector<8x8xf32>
    %14 = tpu.matmul %11, %13, %cst_7 {dimension_numbers = #tpu.dot_dimension_numbers<[1], [1], [0], [0], [0, 0, 1, 0], [], []>} : vector<8x8xbf16>, vector<8x8xbf16>, vector<8x8xf32> -> vector<8x8xf32>
    %cst_8 = arith.constant dense<0xFF800000> : vector<8xf32>
    %15 = vector.multi_reduction <maximumf>, %14, %cst_8 [1] : vector<8x8xf32> to vector<8xf32>
    %16 = vector.shape_cast %15 : vector<8xf32> to vector<8x1xf32>
    %17 = vector.broadcast %16 : vector<8x1xf32> to vector<8x8xf32>
    %18 = arith.subf %14, %17 : vector<8x8xf32>
    %19 = math.exp %18 : vector<8x8xf32>
    %cst_9 = arith.constant dense<0.000000e+00> : vector<8xf32>
    %20 = vector.multi_reduction <add>, %19, %cst_9 [1] : vector<8x8xf32> to vector<8xf32>
    %21 = vector.shape_cast %20 : vector<8xf32> to vector<8x1xf32>
    %22 = tpu.reciprocal %21 {approx = true} : vector<8x1xf32> -> vector<8x1xf32>
    %23 = vector.broadcast %22 : vector<8x1xf32> to vector<8x8xf32>
    %24 = arith.mulf %19, %23 : vector<8x8xf32>
    %25 = arith.truncf %24 : vector<8x8xf32> to vector<8x8xbf16>
    %26 = vector.extract_strided_slice %9 {offsets = [0, 0], sizes = [8, 8], strides = [1, 1]} : vector<8x32xf32> to vector<8x8xf32>
    %27 = arith.truncf %26 : vector<8x8xf32> to vector<8x8xbf16>
    %cst_10 = arith.constant dense<0.000000e+00> : vector<8x8xf32>
    %28 = tpu.matmul %25, %27, %cst_10 {dimension_numbers = #tpu.dot_dimension_numbers<[1], [0], [0], [1], [0, 0, 1, 1], [], []>} : vector<8x8xbf16>, vector<8x8xbf16>, vector<8x8xf32> -> vector<8x8xf32>
    %29 = vector.extract_strided_slice %7 {offsets = [0, 8], sizes = [8, 8], strides = [1, 1]} : vector<8x32xf32> to vector<8x8xf32>
    %30 = arith.truncf %29 : vector<8x8xf32> to vector<8x8xbf16>
    %31 = vector.extract_strided_slice %8 {offsets = [0, 8], sizes = [8, 8], strides = [1, 1]} : vector<8x32xf32> to vector<8x8xf32>
    %32 = arith.truncf %31 : vector<8x8xf32> to vector<8x8xbf16>
    %cst_11 = arith.constant dense<0.000000e+00> : vector<8x8xf32>
    %33 = tpu.matmul %30, %32, %cst_11 {dimension_numbers = #tpu.dot_dimension_numbers<[1], [1], [0], [0], [0, 0, 1, 0], [], []>} : vector<8x8xbf16>, vector<8x8xbf16>, vector<8x8xf32> -> vector<8x8xf32>
    %cst_12 = arith.constant dense<0xFF800000> : vector<8xf32>
    %34 = vector.multi_reduction <maximumf>, %33, %cst_12 [1] : vector<8x8xf32> to vector<8xf32>
    %35 = vector.shape_cast %34 : vector<8xf32> to vector<8x1xf32>
    %36 = vector.broadcast %35 : vector<8x1xf32> to vector<8x8xf32>
    %37 = arith.subf %33, %36 : vector<8x8xf32>
    %38 = math.exp %37 : vector<8x8xf32>
    %cst_13 = arith.constant dense<0.000000e+00> : vector<8xf32>
    %39 = vector.multi_reduction <add>, %38, %cst_13 [1] : vector<8x8xf32> to vector<8xf32>
    %40 = vector.shape_cast %39 : vector<8xf32> to vector<8x1xf32>
    %41 = tpu.reciprocal %40 {approx = true} : vector<8x1xf32> -> vector<8x1xf32>
    %42 = vector.broadcast %41 : vector<8x1xf32> to vector<8x8xf32>
    %43 = arith.mulf %38, %42 : vector<8x8xf32>
    %44 = arith.truncf %43 : vector<8x8xf32> to vector<8x8xbf16>
    %45 = vector.extract_strided_slice %9 {offsets = [0, 8], sizes = [8, 8], strides = [1, 1]} : vector<8x32xf32> to vector<8x8xf32>
    %46 = arith.truncf %45 : vector<8x8xf32> to vector<8x8xbf16>
    %cst_14 = arith.constant dense<0.000000e+00> : vector<8x8xf32>
    %47 = tpu.matmul %44, %46, %cst_14 {dimension_numbers = #tpu.dot_dimension_numbers<[1], [0], [0], [1], [0, 0, 1, 1], [], []>} : vector<8x8xbf16>, vector<8x8xbf16>, vector<8x8xf32> -> vector<8x8xf32>
    %48 = vector.extract_strided_slice %7 {offsets = [0, 16], sizes = [8, 8], strides = [1, 1]} : vector<8x32xf32> to vector<8x8xf32>
    %49 = arith.truncf %48 : vector<8x8xf32> to vector<8x8xbf16>
    %50 = vector.extract_strided_slice %8 {offsets = [0, 16], sizes = [8, 8], strides = [1, 1]} : vector<8x32xf32> to vector<8x8xf32>
    %51 = arith.truncf %50 : vector<8x8xf32> to vector<8x8xbf16>
    %cst_15 = arith.constant dense<0.000000e+00> : vector<8x8xf32>
    %52 = tpu.matmul %49, %51, %cst_15 {dimension_numbers = #tpu.dot_dimension_numbers<[1], [1], [0], [0], [0, 0, 1, 0], [], []>} : vector<8x8xbf16>, vector<8x8xbf16>, vector<8x8xf32> -> vector<8x8xf32>
    %cst_16 = arith.constant dense<0xFF800000> : vector<8xf32>
    %53 = vector.multi_reduction <maximumf>, %52, %cst_16 [1] : vector<8x8xf32> to vector<8xf32>
    %54 = vector.shape_cast %53 : vector<8xf32> to vector<8x1xf32>
    %55 = vector.broadcast %54 : vector<8x1xf32> to vector<8x8xf32>
    %56 = arith.subf %52, %55 : vector<8x8xf32>
    %57 = math.exp %56 : vector<8x8xf32>
    %cst_17 = arith.constant dense<0.000000e+00> : vector<8xf32>
    %58 = vector.multi_reduction <add>, %57, %cst_17 [1] : vector<8x8xf32> to vector<8xf32>
    %59 = vector.shape_cast %58 : vector<8xf32> to vector<8x1xf32>
    %60 = tpu.reciprocal %59 {approx = true} : vector<8x1xf32> -> vector<8x1xf32>
    %61 = vector.broadcast %60 : vector<8x1xf32> to vector<8x8xf32>
    %62 = arith.mulf %57, %61 : vector<8x8xf32>
    %63 = arith.truncf %62 : vector<8x8xf32> to vector<8x8xbf16>
    %64 = vector.extract_strided_slice %9 {offsets = [0, 16], sizes = [8, 8], strides = [1, 1]} : vector<8x32xf32> to vector<8x8xf32>
    %65 = arith.truncf %64 : vector<8x8xf32> to vector<8x8xbf16>
    %cst_18 = arith.constant dense<0.000000e+00> : vector<8x8xf32>
    %66 = tpu.matmul %63, %65, %cst_18 {dimension_numbers = #tpu.dot_dimension_numbers<[1], [0], [0], [1], [0, 0, 1, 1], [], []>} : vector<8x8xbf16>, vector<8x8xbf16>, vector<8x8xf32> -> vector<8x8xf32>
    %67 = vector.extract_strided_slice %7 {offsets = [0, 24], sizes = [8, 8], strides = [1, 1]} : vector<8x32xf32> to vector<8x8xf32>
    %68 = arith.truncf %67 : vector<8x8xf32> to vector<8x8xbf16>
    %69 = vector.extract_strided_slice %8 {offsets = [0, 24], sizes = [8, 8], strides = [1, 1]} : vector<8x32xf32> to vector<8x8xf32>
    %70 = arith.truncf %69 : vector<8x8xf32> to vector<8x8xbf16>
    %cst_19 = arith.constant dense<0.000000e+00> : vector<8x8xf32>
    %71 = tpu.matmul %68, %70, %cst_19 {dimension_numbers = #tpu.dot_dimension_numbers<[1], [1], [0], [0], [0, 0, 1, 0], [], []>} : vector<8x8xbf16>, vector<8x8xbf16>, vector<8x8xf32> -> vector<8x8xf32>
    %cst_20 = arith.constant dense<0xFF800000> : vector<8xf32>
    %72 = vector.multi_reduction <maximumf>, %71, %cst_20 [1] : vector<8x8xf32> to vector<8xf32>
    %73 = vector.shape_cast %72 : vector<8xf32> to vector<8x1xf32>
    %74 = vector.broadcast %73 : vector<8x1xf32> to vector<8x8xf32>
    %75 = arith.subf %71, %74 : vector<8x8xf32>
    %76 = math.exp %75 : vector<8x8xf32>
    %cst_21 = arith.constant dense<0.000000e+00> : vector<8xf32>
    %77 = vector.multi_reduction <add>, %76, %cst_21 [1] : vector<8x8xf32> to vector<8xf32>
    %78 = vector.shape_cast %77 : vector<8xf32> to vector<8x1xf32>
    %79 = tpu.reciprocal %78 {approx = true} : vector<8x1xf32> -> vector<8x1xf32>
    %80 = vector.broadcast %79 : vector<8x1xf32> to vector<8x8xf32>
    %81 = arith.mulf %76, %80 : vector<8x8xf32>
    %82 = arith.truncf %81 : vector<8x8xf32> to vector<8x8xbf16>
    %83 = vector.extract_strided_slice %9 {offsets = [0, 24], sizes = [8, 8], strides = [1, 1]} : vector<8x32xf32> to vector<8x8xf32>
    %84 = arith.truncf %83 : vector<8x8xf32> to vector<8x8xbf16>
    %cst_22 = arith.constant dense<0.000000e+00> : vector<8x8xf32>
    %85 = tpu.matmul %82, %84, %cst_22 {dimension_numbers = #tpu.dot_dimension_numbers<[1], [0], [0], [1], [0, 0, 1, 1], [], []>} : vector<8x8xbf16>, vector<8x8xbf16>, vector<8x8xf32> -> vector<8x8xf32>
    %86 = tpu.concatenate %28, %47, %66, %85 in 1 : vector<8x8xf32>, vector<8x8xf32>, vector<8x8xf32>, vector<8x8xf32> -> vector<8x32xf32>
    %87 = arith.truncf %86 : vector<8x32xf32> to vector<8x32xbf16>
    %c0_23 = arith.constant 0 : index
    %c0_24 = arith.constant 0 : index
    %88 = vector.load %arg5[%c0_23, %c0_24] : memref<32x32xbf16, #tpu.memory_space<vmem>>, vector<32x32xbf16>
    %cst_25 = arith.constant dense<0.000000e+00> : vector<8x32xf32>
    %89 = tpu.matmul %87, %88, %cst_25 {dimension_numbers = #tpu.dot_dimension_numbers<[1], [0], [0], [1], [0, 0, 1, 1], [], []>} : vector<8x32xbf16>, vector<32x32xbf16>, vector<8x32xf32> -> vector<8x32xf32>
    %90 = arith.addf %89, %1 : vector<8x32xf32>
    %cst_26 = arith.constant dense<0.000000e+00> : vector<8xf32>
    %91 = vector.multi_reduction <add>, %90, %cst_26 [1] : vector<8x32xf32> to vector<8xf32>
    %92 = vector.shape_cast %91 : vector<8xf32> to vector<8x1xf32>
    %cst_27 = arith.constant 3.200000e+01 : f32
    %93 = vector.broadcast %cst_27 : f32 to vector<8x1xf32>
    %94 = arith.divf %92, %93 : vector<8x1xf32>
    %95 = vector.broadcast %94 : vector<8x1xf32> to vector<8x32xf32>
    %96 = arith.subf %90, %95 : vector<8x32xf32>
    %97 = arith.mulf %96, %96 : vector<8x32xf32>
    %cst_28 = arith.constant dense<0.000000e+00> : vector<8xf32>
    %98 = vector.multi_reduction <add>, %97, %cst_28 [1] : vector<8x32xf32> to vector<8xf32>
    %99 = vector.shape_cast %98 : vector<8xf32> to vector<8x1xf32>
    %cst_29 = arith.constant 3.200000e+01 : f32
    %100 = vector.broadcast %cst_29 : f32 to vector<8x1xf32>
    %101 = arith.divf %99, %100 : vector<8x1xf32>
    %cst_30 = arith.constant 9.99999974E-6 : f32
    %102 = vector.broadcast %cst_30 : f32 to vector<8x1xf32>
    %103 = arith.addf %101, %102 : vector<8x1xf32>
    %104 = math.rsqrt %103 : vector<8x1xf32>
    %105 = vector.broadcast %104 : vector<8x1xf32> to vector<8x32xf32>
    %106 = arith.mulf %96, %105 : vector<8x32xf32>
    %c0_31 = arith.constant 0 : index
    %c0_32 = arith.constant 0 : index
    %107 = vector.load %arg9[%c0_31, %c0_32] : memref<1x32xf32, #tpu.memory_space<vmem>>, vector<1x32xf32>
    %108 = vector.broadcast %107 : vector<1x32xf32> to vector<8x32xf32>
    %109 = arith.mulf %106, %108 : vector<8x32xf32>
    %c0_33 = arith.constant 0 : index
    %c0_34 = arith.constant 0 : index
    %110 = vector.load %arg10[%c0_33, %c0_34] : memref<1x32xf32, #tpu.memory_space<vmem>>, vector<1x32xf32>
    %111 = vector.broadcast %110 : vector<1x32xf32> to vector<8x32xf32>
    %112 = arith.addf %109, %111 : vector<8x32xf32>
    %113 = arith.truncf %112 : vector<8x32xf32> to vector<8x32xbf16>
    %c0_35 = arith.constant 0 : index
    %c0_36 = arith.constant 0 : index
    %114 = vector.load %arg6[%c0_35, %c0_36] : memref<32x32xbf16, #tpu.memory_space<vmem>>, vector<32x32xbf16>
    %cst_37 = arith.constant dense<0.000000e+00> : vector<8x32xf32>
    %115 = tpu.matmul %113, %114, %cst_37 {dimension_numbers = #tpu.dot_dimension_numbers<[1], [0], [0], [1], [0, 0, 1, 1], [], []>} : vector<8x32xbf16>, vector<32x32xbf16>, vector<8x32xf32> -> vector<8x32xf32>
    %116 = arith.truncf %3 : vector<8x32xf32> to vector<8x32xbf16>
    %c0_38 = arith.constant 0 : index
    %c0_39 = arith.constant 0 : index
    %117 = vector.load %arg7[%c0_38, %c0_39] : memref<32x64xbf16, #tpu.memory_space<vmem>>, vector<32x64xbf16>
    %cst_40 = arith.constant dense<0.000000e+00> : vector<8x64xf32>
    %118 = tpu.matmul %116, %117, %cst_40 {dimension_numbers = #tpu.dot_dimension_numbers<[1], [0], [0], [1], [0, 0, 1, 1], [], []>} : vector<8x32xbf16>, vector<32x64xbf16>, vector<8x64xf32> -> vector<8x64xf32>
    %119 = tpu.iota {dimensions = array<i32: 1>} : vector<8x8xi32>
    %c4_i32 = arith.constant 4 : i32
    %120 = arith.muli %arg0, %c4_i32 : i32
    %c0_i32 = arith.constant 0 : i32
    %121 = arith.addi %120, %c0_i32 : i32
    %c2_i32 = arith.constant 2 : i32
    %c0_i32_41 = arith.constant 0 : i32
    %122 = arith.cmpi eq, %c2_i32, %c0_i32_41 : i32
    %c1_i32 = arith.constant 1 : i32
    %123 = arith.select %122, %c1_i32, %c2_i32 : i32
    %124 = arith.remsi %121, %123 : i32
    %c0_i32_42 = arith.constant 0 : i32
    %125 = arith.cmpi ne, %124, %c0_i32_42 : i32
    %c0_i32_43 = arith.constant 0 : i32
    %126 = arith.cmpi slt, %124, %c0_i32_43 : i32
    %c0_i32_44 = arith.constant 0 : i32
    %127 = arith.cmpi slt, %123, %c0_i32_44 : i32
    %128 = arith.xori %126, %127 : i1
    %129 = arith.andi %128, %125 : i1
    %130 = arith.addi %124, %123 : i32
    %131 = arith.select %129, %130, %124 : i32
    %132 = arith.index_cast %131 : i32 to index
    %133 = memref.load %arg1[%132] : memref<2xi32, #tpu.memory_space<smem>>
    %134 = vector.broadcast %133 : i32 to vector<8x8xi32>
    %135 = arith.cmpi slt, %119, %134 : vector<8x8xi32>
    %c4_i32_45 = arith.constant 4 : i32
    %136 = arith.muli %arg0, %c4_i32_45 : i32
    %c1_i32_46 = arith.constant 1 : i32
    %137 = arith.addi %136, %c1_i32_46 : i32
    %c2_i32_47 = arith.constant 2 : i32
    %c0_i32_48 = arith.constant 0 : i32
    %138 = arith.cmpi eq, %c2_i32_47, %c0_i32_48 : i32
    %c1_i32_49 = arith.constant 1 : i32
    %139 = arith.select %138, %c1_i32_49, %c2_i32_47 : i32
    %140 = arith.remsi %137, %139 : i32
    %c0_i32_50 = arith.constant 0 : i32
    %141 = arith.cmpi ne, %140, %c0_i32_50 : i32
    %c0_i32_51 = arith.constant 0 : i32
    %142 = arith.cmpi slt, %140, %c0_i32_51 : i32
    %c0_i32_52 = arith.constant 0 : i32
    %143 = arith.cmpi slt, %139, %c0_i32_52 : i32
    %144 = arith.xori %142, %143 : i1
    %145 = arith.andi %144, %141 : i1
    %146 = arith.addi %140, %139 : i32
    %147 = arith.select %145, %146, %140 : i32
    %148 = arith.index_cast %147 : i32 to index
    %149 = memref.load %arg1[%148] : memref<2xi32, #tpu.memory_space<smem>>
    %150 = vector.broadcast %149 : i32 to vector<8x8xi32>
    %151 = arith.cmpi slt, %119, %150 : vector<8x8xi32>
    %c4_i32_53 = arith.constant 4 : i32
    %152 = arith.muli %arg0, %c4_i32_53 : i32
    %c2_i32_54 = arith.constant 2 : i32
    %153 = arith.addi %152, %c2_i32_54 : i32
    %c2_i32_55 = arith.constant 2 : i32
    %c0_i32_56 = arith.constant 0 : i32
    %154 = arith.cmpi eq, %c2_i32_55, %c0_i32_56 : i32
    %c1_i32_57 = arith.constant 1 : i32
    %155 = arith.select %154, %c1_i32_57, %c2_i32_55 : i32
    %156 = arith.remsi %153, %155 : i32
    %c0_i32_58 = arith.constant 0 : i32
    %157 = arith.cmpi ne, %156, %c0_i32_58 : i32
    %c0_i32_59 = arith.constant 0 : i32
    %158 = arith.cmpi slt, %156, %c0_i32_59 : i32
    %c0_i32_60 = arith.constant 0 : i32
    %159 = arith.cmpi slt, %155, %c0_i32_60 : i32
    %160 = arith.xori %158, %159 : i1
    %161 = arith.andi %160, %157 : i1
    %162 = arith.addi %156, %155 : i32
    %163 = arith.select %161, %162, %156 : i32
    %164 = arith.index_cast %163 : i32 to index
    %165 = memref.load %arg1[%164] : memref<2xi32, #tpu.memory_space<smem>>
    %166 = vector.broadcast %165 : i32 to vector<8x8xi32>
    %167 = arith.cmpi slt, %119, %166 : vector<8x8xi32>
    %c4_i32_61 = arith.constant 4 : i32
    %168 = arith.muli %arg0, %c4_i32_61 : i32
    %c3_i32 = arith.constant 3 : i32
    %169 = arith.addi %168, %c3_i32 : i32
    %c2_i32_62 = arith.constant 2 : i32
    %c0_i32_63 = arith.constant 0 : i32
    %170 = arith.cmpi eq, %c2_i32_62, %c0_i32_63 : i32
    %c1_i32_64 = arith.constant 1 : i32
    %171 = arith.select %170, %c1_i32_64, %c2_i32_62 : i32
    %172 = arith.remsi %169, %171 : i32
    %c0_i32_65 = arith.constant 0 : i32
    %173 = arith.cmpi ne, %172, %c0_i32_65 : i32
    %c0_i32_66 = arith.constant 0 : i32
    %174 = arith.cmpi slt, %172, %c0_i32_66 : i32
    %c0_i32_67 = arith.constant 0 : i32
    %175 = arith.cmpi slt, %171, %c0_i32_67 : i32
    %176 = arith.xori %174, %175 : i1
    %177 = arith.andi %176, %173 : i1
    %178 = arith.addi %172, %171 : i32
    %179 = arith.select %177, %178, %172 : i32
    %180 = arith.index_cast %179 : i32 to index
    %181 = memref.load %arg1[%180] : memref<2xi32, #tpu.memory_space<smem>>
    %182 = vector.broadcast %181 : i32 to vector<8x8xi32>
    %183 = arith.cmpi slt, %119, %182 : vector<8x8xi32>
    %184 = vector.extract_strided_slice %118 {offsets = [0, 0], sizes = [8, 32], strides = [1, 1]} : vector<8x64xf32> to vector<8x32xf32>
    %185 = vector.extract_strided_slice %118 {offsets = [0, 32], sizes = [8, 32], strides = [1, 1]} : vector<8x64xf32> to vector<8x32xf32>
    %186 = vector.extract_strided_slice %115 {offsets = [0, 0], sizes = [8, 8], strides = [1, 1]} : vector<8x32xf32> to vector<8x8xf32>
    %187 = arith.truncf %186 : vector<8x8xf32> to vector<8x8xbf16>
    %188 = vector.extract_strided_slice %184 {offsets = [0, 0], sizes = [8, 8], strides = [1, 1]} : vector<8x32xf32> to vector<8x8xf32>
    %189 = arith.truncf %188 : vector<8x8xf32> to vector<8x8xbf16>
    %cst_68 = arith.constant dense<0.000000e+00> : vector<8x8xf32>
    %190 = tpu.matmul %187, %189, %cst_68 {dimension_numbers = #tpu.dot_dimension_numbers<[1], [1], [0], [0], [0, 0, 1, 0], [], []>} : vector<8x8xbf16>, vector<8x8xbf16>, vector<8x8xf32> -> vector<8x8xf32>
    %cst_69 = arith.constant -1.000000e+06 : f32
    %191 = vector.broadcast %cst_69 : f32 to vector<8x8xf32>
    %192 = arith.select %135, %190, %191 : vector<8x8xi1>, vector<8x8xf32>
    %cst_70 = arith.constant dense<0xFF800000> : vector<8xf32>
    %193 = vector.multi_reduction <maximumf>, %192, %cst_70 [1] : vector<8x8xf32> to vector<8xf32>
    %194 = vector.shape_cast %193 : vector<8xf32> to vector<8x1xf32>
    %195 = vector.broadcast %194 : vector<8x1xf32> to vector<8x8xf32>
    %196 = arith.subf %192, %195 : vector<8x8xf32>
    %197 = math.exp %196 : vector<8x8xf32>
    %cst_71 = arith.constant dense<0.000000e+00> : vector<8xf32>
    %198 = vector.multi_reduction <add>, %197, %cst_71 [1] : vector<8x8xf32> to vector<8xf32>
    %199 = vector.shape_cast %198 : vector<8xf32> to vector<8x1xf32>
    %200 = tpu.reciprocal %199 {approx = true} : vector<8x1xf32> -> vector<8x1xf32>
    %201 = vector.broadcast %200 : vector<8x1xf32> to vector<8x8xf32>
    %202 = arith.mulf %197, %201 : vector<8x8xf32>
    %203 = arith.truncf %202 : vector<8x8xf32> to vector<8x8xbf16>
    %204 = vector.extract_strided_slice %185 {offsets = [0, 0], sizes = [8, 8], strides = [1, 1]} : vector<8x32xf32> to vector<8x8xf32>
    %205 = arith.truncf %204 : vector<8x8xf32> to vector<8x8xbf16>
    %cst_72 = arith.constant dense<0.000000e+00> : vector<8x8xf32>
    %206 = tpu.matmul %203, %205, %cst_72 {dimension_numbers = #tpu.dot_dimension_numbers<[1], [0], [0], [1], [0, 0, 1, 1], [], []>} : vector<8x8xbf16>, vector<8x8xbf16>, vector<8x8xf32> -> vector<8x8xf32>
    %207 = vector.extract_strided_slice %115 {offsets = [0, 8], sizes = [8, 8], strides = [1, 1]} : vector<8x32xf32> to vector<8x8xf32>
    %208 = arith.truncf %207 : vector<8x8xf32> to vector<8x8xbf16>
    %209 = vector.extract_strided_slice %184 {offsets = [0, 8], sizes = [8, 8], strides = [1, 1]} : vector<8x32xf32> to vector<8x8xf32>
    %210 = arith.truncf %209 : vector<8x8xf32> to vector<8x8xbf16>
    %cst_73 = arith.constant dense<0.000000e+00> : vector<8x8xf32>
    %211 = tpu.matmul %208, %210, %cst_73 {dimension_numbers = #tpu.dot_dimension_numbers<[1], [1], [0], [0], [0, 0, 1, 0], [], []>} : vector<8x8xbf16>, vector<8x8xbf16>, vector<8x8xf32> -> vector<8x8xf32>
    %cst_74 = arith.constant -1.000000e+06 : f32
    %212 = vector.broadcast %cst_74 : f32 to vector<8x8xf32>
    %213 = arith.select %151, %211, %212 : vector<8x8xi1>, vector<8x8xf32>
    %cst_75 = arith.constant dense<0xFF800000> : vector<8xf32>
    %214 = vector.multi_reduction <maximumf>, %213, %cst_75 [1] : vector<8x8xf32> to vector<8xf32>
    %215 = vector.shape_cast %214 : vector<8xf32> to vector<8x1xf32>
    %216 = vector.broadcast %215 : vector<8x1xf32> to vector<8x8xf32>
    %217 = arith.subf %213, %216 : vector<8x8xf32>
    %218 = math.exp %217 : vector<8x8xf32>
    %cst_76 = arith.constant dense<0.000000e+00> : vector<8xf32>
    %219 = vector.multi_reduction <add>, %218, %cst_76 [1] : vector<8x8xf32> to vector<8xf32>
    %220 = vector.shape_cast %219 : vector<8xf32> to vector<8x1xf32>
    %221 = tpu.reciprocal %220 {approx = true} : vector<8x1xf32> -> vector<8x1xf32>
    %222 = vector.broadcast %221 : vector<8x1xf32> to vector<8x8xf32>
    %223 = arith.mulf %218, %222 : vector<8x8xf32>
    %224 = arith.truncf %223 : vector<8x8xf32> to vector<8x8xbf16>
    %225 = vector.extract_strided_slice %185 {offsets = [0, 8], sizes = [8, 8], strides = [1, 1]} : vector<8x32xf32> to vector<8x8xf32>
    %226 = arith.truncf %225 : vector<8x8xf32> to vector<8x8xbf16>
    %cst_77 = arith.constant dense<0.000000e+00> : vector<8x8xf32>
    %227 = tpu.matmul %224, %226, %cst_77 {dimension_numbers = #tpu.dot_dimension_numbers<[1], [0], [0], [1], [0, 0, 1, 1], [], []>} : vector<8x8xbf16>, vector<8x8xbf16>, vector<8x8xf32> -> vector<8x8xf32>
    %228 = vector.extract_strided_slice %115 {offsets = [0, 16], sizes = [8, 8], strides = [1, 1]} : vector<8x32xf32> to vector<8x8xf32>
    %229 = arith.truncf %228 : vector<8x8xf32> to vector<8x8xbf16>
    %230 = vector.extract_strided_slice %184 {offsets = [0, 16], sizes = [8, 8], strides = [1, 1]} : vector<8x32xf32> to vector<8x8xf32>
    %231 = arith.truncf %230 : vector<8x8xf32> to vector<8x8xbf16>
    %cst_78 = arith.constant dense<0.000000e+00> : vector<8x8xf32>
    %232 = tpu.matmul %229, %231, %cst_78 {dimension_numbers = #tpu.dot_dimension_numbers<[1], [1], [0], [0], [0, 0, 1, 0], [], []>} : vector<8x8xbf16>, vector<8x8xbf16>, vector<8x8xf32> -> vector<8x8xf32>
    %cst_79 = arith.constant -1.000000e+06 : f32
    %233 = vector.broadcast %cst_79 : f32 to vector<8x8xf32>
    %234 = arith.select %167, %232, %233 : vector<8x8xi1>, vector<8x8xf32>
    %cst_80 = arith.constant dense<0xFF800000> : vector<8xf32>
    %235 = vector.multi_reduction <maximumf>, %234, %cst_80 [1] : vector<8x8xf32> to vector<8xf32>
    %236 = vector.shape_cast %235 : vector<8xf32> to vector<8x1xf32>
    %237 = vector.broadcast %236 : vector<8x1xf32> to vector<8x8xf32>
    %238 = arith.subf %234, %237 : vector<8x8xf32>
    %239 = math.exp %238 : vector<8x8xf32>
    %cst_81 = arith.constant dense<0.000000e+00> : vector<8xf32>
    %240 = vector.multi_reduction <add>, %239, %cst_81 [1] : vector<8x8xf32> to vector<8xf32>
    %241 = vector.shape_cast %240 : vector<8xf32> to vector<8x1xf32>
    %242 = tpu.reciprocal %241 {approx = true} : vector<8x1xf32> -> vector<8x1xf32>
    %243 = vector.broadcast %242 : vector<8x1xf32> to vector<8x8xf32>
    %244 = arith.mulf %239, %243 : vector<8x8xf32>
    %245 = arith.truncf %244 : vector<8x8xf32> to vector<8x8xbf16>
    %246 = vector.extract_strided_slice %185 {offsets = [0, 16], sizes = [8, 8], strides = [1, 1]} : vector<8x32xf32> to vector<8x8xf32>
    %247 = arith.truncf %246 : vector<8x8xf32> to vector<8x8xbf16>
    %cst_82 = arith.constant dense<0.000000e+00> : vector<8x8xf32>
    %248 = tpu.matmul %245, %247, %cst_82 {dimension_numbers = #tpu.dot_dimension_numbers<[1], [0], [0], [1], [0, 0, 1, 1], [], []>} : vector<8x8xbf16>, vector<8x8xbf16>, vector<8x8xf32> -> vector<8x8xf32>
    %249 = vector.extract_strided_slice %115 {offsets = [0, 24], sizes = [8, 8], strides = [1, 1]} : vector<8x32xf32> to vector<8x8xf32>
    %250 = arith.truncf %249 : vector<8x8xf32> to vector<8x8xbf16>
    %251 = vector.extract_strided_slice %184 {offsets = [0, 24], sizes = [8, 8], strides = [1, 1]} : vector<8x32xf32> to vector<8x8xf32>
    %252 = arith.truncf %251 : vector<8x8xf32> to vector<8x8xbf16>
    %cst_83 = arith.constant dense<0.000000e+00> : vector<8x8xf32>
    %253 = tpu.matmul %250, %252, %cst_83 {dimension_numbers = #tpu.dot_dimension_numbers<[1], [1], [0], [0], [0, 0, 1, 0], [], []>} : vector<8x8xbf16>, vector<8x8xbf16>, vector<8x8xf32> -> vector<8x8xf32>
    %cst_84 = arith.constant -1.000000e+06 : f32
    %254 = vector.broadcast %cst_84 : f32 to vector<8x8xf32>
    %255 = arith.select %183, %253, %254 : vector<8x8xi1>, vector<8x8xf32>
    %cst_85 = arith.constant dense<0xFF800000> : vector<8xf32>
    %256 = vector.multi_reduction <maximumf>, %255, %cst_85 [1] : vector<8x8xf32> to vector<8xf32>
    %257 = vector.shape_cast %256 : vector<8xf32> to vector<8x1xf32>
    %258 = vector.broadcast %257 : vector<8x1xf32> to vector<8x8xf32>
    %259 = arith.subf %255, %258 : vector<8x8xf32>
    %260 = math.exp %259 : vector<8x8xf32>
    %cst_86 = arith.constant dense<0.000000e+00> : vector<8xf32>
    %261 = vector.multi_reduction <add>, %260, %cst_86 [1] : vector<8x8xf32> to vector<8xf32>
    %262 = vector.shape_cast %261 : vector<8xf32> to vector<8x1xf32>
    %263 = tpu.reciprocal %262 {approx = true} : vector<8x1xf32> -> vector<8x1xf32>
    %264 = vector.broadcast %263 : vector<8x1xf32> to vector<8x8xf32>
    %265 = arith.mulf %260, %264 : vector<8x8xf32>
    %266 = arith.truncf %265 : vector<8x8xf32> to vector<8x8xbf16>
    %267 = vector.extract_strided_slice %185 {offsets = [0, 24], sizes = [8, 8], strides = [1, 1]} : vector<8x32xf32> to vector<8x8xf32>
    %268 = arith.truncf %267 : vector<8x8xf32> to vector<8x8xbf16>
    %cst_87 = arith.constant dense<0.000000e+00> : vector<8x8xf32>
    %269 = tpu.matmul %266, %268, %cst_87 {dimension_numbers = #tpu.dot_dimension_numbers<[1], [0], [0], [1], [0, 0, 1, 1], [], []>} : vector<8x8xbf16>, vector<8x8xbf16>, vector<8x8xf32> -> vector<8x8xf32>
    %270 = tpu.concatenate %206, %227, %248, %269 in 1 : vector<8x8xf32>, vector<8x8xf32>, vector<8x8xf32>, vector<8x8xf32> -> vector<8x32xf32>
    %271 = arith.truncf %270 : vector<8x32xf32> to vector<8x32xbf16>
    %c0_88 = arith.constant 0 : index
    %c0_89 = arith.constant 0 : index
    %272 = vector.load %arg8[%c0_88, %c0_89] : memref<32x32xbf16, #tpu.memory_space<vmem>>, vector<32x32xbf16>
    %cst_90 = arith.constant dense<0.000000e+00> : vector<8x32xf32>
    %273 = tpu.matmul %271, %272, %cst_90 {dimension_numbers = #tpu.dot_dimension_numbers<[1], [0], [0], [1], [0, 0, 1, 1], [], []>} : vector<8x32xbf16>, vector<32x32xbf16>, vector<8x32xf32> -> vector<8x32xf32>
    %274 = arith.addf %273, %112 : vector<8x32xf32>
    %cst_91 = arith.constant dense<0.000000e+00> : vector<8xf32>
    %275 = vector.multi_reduction <add>, %274, %cst_91 [1] : vector<8x32xf32> to vector<8xf32>
    %276 = vector.shape_cast %275 : vector<8xf32> to vector<8x1xf32>
    %cst_92 = arith.constant 3.200000e+01 : f32
    %277 = vector.broadcast %cst_92 : f32 to vector<8x1xf32>
    %278 = arith.divf %276, %277 : vector<8x1xf32>
    %279 = vector.broadcast %278 : vector<8x1xf32> to vector<8x32xf32>
    %280 = arith.subf %274, %279 : vector<8x32xf32>
    %281 = arith.mulf %280, %280 : vector<8x32xf32>
    %cst_93 = arith.constant dense<0.000000e+00> : vector<8xf32>
    %282 = vector.multi_reduction <add>, %281, %cst_93 [1] : vector<8x32xf32> to vector<8xf32>
    %283 = vector.shape_cast %282 : vector<8xf32> to vector<8x1xf32>
    %cst_94 = arith.constant 3.200000e+01 : f32
    %284 = vector.broadcast %cst_94 : f32 to vector<8x1xf32>
    %285 = arith.divf %283, %284 : vector<8x1xf32>
    %cst_95 = arith.constant 9.99999974E-6 : f32
    %286 = vector.broadcast %cst_95 : f32 to vector<8x1xf32>
    %287 = arith.addf %285, %286 : vector<8x1xf32>
    %288 = math.rsqrt %287 : vector<8x1xf32>
    %289 = vector.broadcast %288 : vector<8x1xf32> to vector<8x32xf32>
    %290 = arith.mulf %280, %289 : vector<8x32xf32>
    %c0_96 = arith.constant 0 : index
    %c0_97 = arith.constant 0 : index
    %291 = vector.load %arg11[%c0_96, %c0_97] : memref<1x32xf32, #tpu.memory_space<vmem>>, vector<1x32xf32>
    %292 = vector.broadcast %291 : vector<1x32xf32> to vector<8x32xf32>
    %293 = arith.mulf %290, %292 : vector<8x32xf32>
    %c0_98 = arith.constant 0 : index
    %c0_99 = arith.constant 0 : index
    %294 = vector.load %arg12[%c0_98, %c0_99] : memref<1x32xf32, #tpu.memory_space<vmem>>, vector<1x32xf32>
    %295 = vector.broadcast %294 : vector<1x32xf32> to vector<8x32xf32>
    %296 = arith.addf %293, %295 : vector<8x32xf32>
    %297 = arith.truncf %296 : vector<8x32xf32> to vector<8x32xbf16>
    %c0_100 = arith.constant 0 : index
    %c0_101 = arith.constant 0 : index
    %298 = vector.load %arg15[%c0_100, %c0_101] : memref<32x64xbf16, #tpu.memory_space<vmem>>, vector<32x64xbf16>
    %cst_102 = arith.constant dense<0.000000e+00> : vector<8x64xf32>
    %299 = tpu.matmul %297, %298, %cst_102 {dimension_numbers = #tpu.dot_dimension_numbers<[1], [0], [0], [1], [0, 0, 1, 1], [], []>} : vector<8x32xbf16>, vector<32x64xbf16>, vector<8x64xf32> -> vector<8x64xf32>
    %c0_103 = arith.constant 0 : index
    %c0_104 = arith.constant 0 : index
    %300 = vector.load %arg16[%c0_103, %c0_104] : memref<1x64xf32, #tpu.memory_space<vmem>>, vector<1x64xf32>
    %301 = vector.broadcast %300 : vector<1x64xf32> to vector<8x64xf32>
    %302 = arith.addf %299, %301 : vector<8x64xf32>
    %cst_105 = arith.constant 0.000000e+00 : f32
    %303 = vector.broadcast %cst_105 : f32 to vector<8x64xf32>
    %304 = arith.maximumf %302, %303 : vector<8x64xf32>
    %305 = arith.truncf %304 : vector<8x64xf32> to vector<8x64xbf16>
    %c0_106 = arith.constant 0 : index
    %c0_107 = arith.constant 0 : index
    %306 = vector.load %arg17[%c0_106, %c0_107] : memref<64x32xbf16, #tpu.memory_space<vmem>>, vector<64x32xbf16>
    %cst_108 = arith.constant dense<0.000000e+00> : vector<8x32xf32>
    %307 = tpu.matmul %305, %306, %cst_108 {dimension_numbers = #tpu.dot_dimension_numbers<[1], [0], [0], [1], [0, 0, 1, 1], [], []>} : vector<8x64xbf16>, vector<64x32xbf16>, vector<8x32xf32> -> vector<8x32xf32>
    %c0_109 = arith.constant 0 : index
    %c0_110 = arith.constant 0 : index
    %308 = vector.load %arg18[%c0_109, %c0_110] : memref<1x32xf32, #tpu.memory_space<vmem>>, vector<1x32xf32>
    %309 = vector.broadcast %308 : vector<1x32xf32> to vector<8x32xf32>
    %310 = arith.addf %307, %309 : vector<8x32xf32>
    %311 = arith.addf %310, %296 : vector<8x32xf32>
    %cst_111 = arith.constant dense<0.000000e+00> : vector<8xf32>
    %312 = vector.multi_reduction <add>, %311, %cst_111 [1] : vector<8x32xf32> to vector<8xf32>
    %313 = vector.shape_cast %312 : vector<8xf32> to vector<8x1xf32>
    %cst_112 = arith.constant 3.200000e+01 : f32
    %314 = vector.broadcast %cst_112 : f32 to vector<8x1xf32>
    %315 = arith.divf %313, %314 : vector<8x1xf32>
    %316 = vector.broadcast %315 : vector<8x1xf32> to vector<8x32xf32>
    %317 = arith.subf %311, %316 : vector<8x32xf32>
    %318 = arith.mulf %317, %317 : vector<8x32xf32>
    %cst_113 = arith.constant dense<0.000000e+00> : vector<8xf32>
    %319 = vector.multi_reduction <add>, %318, %cst_113 [1] : vector<8x32xf32> to vector<8xf32>
    %320 = vector.shape_cast %319 : vector<8xf32> to vector<8x1xf32>
    %cst_114 = arith.constant 3.200000e+01 : f32
    %321 = vector.broadcast %cst_114 : f32 to vector<8x1xf32>
    %322 = arith.divf %320, %321 : vector<8x1xf32>
    %cst_115 = arith.constant 9.99999974E-6 : f32
    %323 = vector.broadcast %cst_115 : f32 to vector<8x1xf32>
    %324 = arith.addf %322, %323 : vector<8x1xf32>
    %325 = math.rsqrt %324 : vector<8x1xf32>
    %326 = vector.broadcast %325 : vector<8x1xf32> to vector<8x32xf32>
    %327 = arith.mulf %317, %326 : vector<8x32xf32>
    %c0_116 = arith.constant 0 : index
    %c0_117 = arith.constant 0 : index
    %328 = vector.load %arg13[%c0_116, %c0_117] : memref<1x32xf32, #tpu.memory_space<vmem>>, vector<1x32xf32>
    %329 = vector.broadcast %328 : vector<1x32xf32> to vector<8x32xf32>
    %330 = arith.mulf %327, %329 : vector<8x32xf32>
    %c0_118 = arith.constant 0 : index
    %c0_119 = arith.constant 0 : index
    %331 = vector.load %arg14[%c0_118, %c0_119] : memref<1x32xf32, #tpu.memory_space<vmem>>, vector<1x32xf32>
    %332 = vector.broadcast %331 : vector<1x32xf32> to vector<8x32xf32>
    %333 = arith.addf %330, %332 : vector<8x32xf32>
    %c0_120 = arith.constant 0 : index
    %c0_121 = arith.constant 0 : index
    %c0_122 = arith.constant 0 : index
    %334 = vector.load %arg19[%c0_120, %c0_121, %c0_122] : memref<1x8x32xf32, #tpu.memory_space<vmem>>, vector<1x8x32xf32>
    %335 = vector.shape_cast %334 : vector<1x8x32xf32> to vector<8x32xf32>
    %336 = vector.shape_cast %333 : vector<8x32xf32> to vector<1x8x32xf32>
    tpu.vector_store %arg19[%c0_120, %c0_121, %c0_122], %336 {strides = array<i32>} : memref<1x8x32xf32, #tpu.memory_space<vmem>>, vector<1x8x32xf32>,
    return
  }
  func.func @transform_0(%arg0: i32, %arg1: memref<2xi32, #tpu.memory_space<smem>>) -> (i32, i32, i32) {
    %c0_i32 = arith.constant 0 : i32
    %c0_i32_0 = arith.constant 0 : i32
    %c0_i32_1 = arith.constant 0 : i32
    return %arg0, %c0_i32, %c0_i32_0 : i32, i32, i32
  }
  func.func @transform_1(%arg0: i32, %arg1: memref<2xi32, #tpu.memory_space<smem>>) -> (i32, i32, i32) {
    %c0_i32 = arith.constant 0 : i32
    %c0_i32_0 = arith.constant 0 : i32
    %c0_i32_1 = arith.constant 0 : i32
    return %arg0, %c0_i32, %c0_i32_0 : i32, i32, i32
  }
  func.func @transform_2(%arg0: i32, %arg1: memref<2xi32, #tpu.memory_space<smem>>) -> (i32, i32) {
    %c0_i32 = arith.constant 0 : i32
    %c0_i32_0 = arith.constant 0 : i32
    %c0_i32_1 = arith.constant 0 : i32
    return %c0_i32, %c0_i32_0 : i32, i32
  }
  func.func @transform_3(%arg0: i32, %arg1: memref<2xi32, #tpu.memory_space<smem>>) -> (i32, i32) {
    %c0_i32 = arith.constant 0 : i32
    %c0_i32_0 = arith.constant 0 : i32
    %c0_i32_1 = arith.constant 0 : i32
    return %c0_i32, %c0_i32_0 : i32, i32
  }
  func.func @transform_4(%arg0: i32, %arg1: memref<2xi32, #tpu.memory_space<smem>>) -> (i32, i32) {
    %c0_i32 = arith.constant 0 : i32
    %c0_i32_0 = arith.constant 0 : i32
    %c0_i32_1 = arith.constant 0 : i32
    return %c0_i32, %c0_i32_0 : i32, i32
  }
  func.func @transform_5(%arg0: i32, %arg1: memref<2xi32, #tpu.memory_space<smem>>) -> (i32, i32) {
    %c0_i32 = arith.constant 0 : i32
    %c0_i32_0 = arith.constant 0 : i32
    %c0_i32_1 = arith.constant 0 : i32
    return %c0_i32, %c0_i32_0 : i32, i32
  }
  func.func @transform_6(%arg0: i32, %arg1: memref<2xi32, #tpu.memory_space<smem>>) -> (i32, i32) {
    %c0_i32 = arith.constant 0 : i32
    %c0_i32_0 = arith.constant 0 : i32
    %c0_i32_1 = arith.constant 0 : i32
    return %c0_i32, %c0_i32_0 : i32, i32
  }
  func.func @transform_7(%arg0: i32, %arg1: memref<2xi32, #tpu.memory_space<smem>>) -> (i32, i32) {
    %c0_i32 = arith.constant 0 : i32
    %c0_i32_0 = arith.constant 0 : i32
    %c0_i32_1 = arith.constant 0 : i32
    return %c0_i32, %c0_i32_0 : i32, i32
  }
  func.func @transform_8(%arg0: i32, %arg1: memref<2xi32, #tpu.memory_space<smem>>) -> (i32, i32) {
    %c0_i32 = arith.constant 0 : i32
    %c0_i32_0 = arith.constant 0 : i32
    %c0_i32_1 = arith.constant 0 : i32
    return %c0_i32, %c0_i32_0 : i32, i32
  }
  func.func @transform_9(%arg0: i32, %arg1: memref<2xi32, #tpu.memory_space<smem>>) -> (i32, i32) {
    %c0_i32 = arith.constant 0 : i32
    %c0_i32_0 = arith.constant 0 : i32
    %c0_i32_1 = arith.constant 0 : i32
    return %c0_i32, %c0_i32_0 : i32, i32
  }
  func.func @transform_10(%arg0: i32, %arg1: memref<2xi32, #tpu.memory_space<smem>>) -> (i32, i32) {
    %c0_i32 = arith.constant 0 : i32
    %c0_i32_0 = arith.constant 0 : i32
    %c0_i32_1 = arith.constant 0 : i32
    return %c0_i32, %c0_i32_0 : i32, i32
  }
  func.func @transform_11(%arg0: i32, %arg1: memref<2xi32, #tpu.memory_space<smem>>) -> (i32, i32) {
    %c0_i32 = arith.constant 0 : i32
    %c0_i32_0 = arith.constant 0 : i32
    %c0_i32_1 = arith.constant 0 : i32
    return %c0_i32, %c0_i32_0 : i32, i32
  }
  func.func @transform_12(%arg0: i32, %arg1: memref<2xi32, #tpu.memory_space<smem>>) -> (i32, i32) {
    %c0_i32 = arith.constant 0 : i32
    %c0_i32_0 = arith.constant 0 : i32
    %c0_i32_1 = arith.constant 0 : i32
    return %c0_i32, %c0_i32_0 : i32, i32
  }
  func.func @transform_13(%arg0: i32, %arg1: memref<2xi32, #tpu.memory_space<smem>>) -> (i32, i32) {
    %c0_i32 = arith.constant 0 : i32
    %c0_i32_0 = arith.constant 0 : i32
    %c0_i32_1 = arith.constant 0 : i32
    return %c0_i32, %c0_i32_0 : i32, i32
  }
  func.func @transform_14(%arg0: i32, %arg1: memref<2xi32, #tpu.memory_space<smem>>) -> (i32, i32) {
    %c0_i32 = arith.constant 0 : i32
    %c0_i32_0 = arith.constant 0 : i32
    %c0_i32_1 = arith.constant 0 : i32
    return %c0_i32, %c0_i32_0 : i32, i32
  }
  func.func @transform_15(%arg0: i32, %arg1: memref<2xi32, #tpu.memory_space<smem>>) -> (i32, i32) {
    %c0_i32 = arith.constant 0 : i32
    %c0_i32_0 = arith.constant 0 : i32
    %c0_i32_1 = arith.constant 0 : i32
    return %c0_i32, %c0_i32_0 : i32, i32
  }
  func.func @transform_16(%arg0: i32, %arg1: memref<2xi32, #tpu.memory_space<smem>>) -> (i32, i32) {
    %c0_i32 = arith.constant 0 : i32
    %c0_i32_0 = arith.constant 0 : i32
    %c0_i32_1 = arith.constant 0 : i32
    return %c0_i32, %c0_i32_0 : i32, i32
  }
  func.func @transform_17(%arg0: i32, %arg1: memref<2xi32, #tpu.memory_space<smem>>) -> (i32, i32, i32) {
    %c0_i32 = arith.constant 0 : i32
    %c0_i32_0 = arith.constant 0 : i32
    %c0_i32_1 = arith.constant 0 : i32
    return %arg0, %c0_i32, %c0_i32_0 : i32, i32, i32
  }
}

</mosaic_0001>

<llo_original>
// kernel: tpu_custom_call.1
$region0: #{tpu_custom_call.1}
  #allocation0 [shape = 'u32[]', space=smem, size = 0x4, offset = 0x4, fixed_abs, tag = 'smem constant byte address 0x4 - core index']
  #allocation1 [shape = 'u32[144,128]{1,0:T(1,128)}', space=vmem, size = 0x12000, scoped, tag = 'internal scratch']
  #allocation2 [shape = 's32[1]{0}', space=sflag, size = 0x4, scoped, tag = 'scoped memory for tpu_custom_call.1']
  #allocation3 [shape = 'u8[512]{0}', space=smem, size = 0x200, scoped, tag = 'prefetched SMEM operand 0']
  %s0 = inlined_call_operand.hbm [shape: s32[2], index: 0, kind: input, shape index: {}]
  %s1 = inlined_call_operand.vmem [shape: f32[2,8,32], index: 1, kind: input, shape index: {}]
  %s2 = inlined_call_operand.vmem [shape: f32[2,8,32], index: 2, kind: input, shape index: {}]
  %s3 = inlined_call_operand.vmem [shape: bf16[32,96], index: 3, kind: input, shape index: {}]
  %s4 = inlined_call_operand.hbm [shape: bf16[32,32], index: 4, kind: input, shape index: {}]
  %s5 = inlined_call_operand.hbm [shape: bf16[32,32], index: 5, kind: input, shape index: {}]
  %s6 = inlined_call_operand.hbm [shape: bf16[32,64], index: 6, kind: input, shape index: {}]
  %s7 = inlined_call_operand.hbm [shape: bf16[32,32], index: 7, kind: input, shape index: {}]
  %s8 = inlined_call_operand.hbm [shape: f32[1,32], index: 8, kind: input, shape index: {}]
  %s9 = inlined_call_operand.hbm [shape: f32[1,32], index: 9, kind: input, shape index: {}]
  %s10 = inlined_call_operand.vmem [shape: f32[1,32], index: 10, kind: input, shape index: {}]
  %s11 = inlined_call_operand.vmem [shape: f32[1,32], index: 11, kind: input, shape index: {}]
  %s12 = inlined_call_operand.vmem [shape: f32[1,32], index: 12, kind: input, shape index: {}]
  %s13 = inlined_call_operand.vmem [shape: f32[1,32], index: 13, kind: input, shape index: {}]
  %s14 = inlined_call_operand.vmem [shape: bf16[32,64], index: 14, kind: input, shape index: {}]
  %s15 = inlined_call_operand.vmem [shape: f32[1,64], index: 15, kind: input, shape index: {}]
  %s16 = inlined_call_operand.vmem [shape: bf16[64,32], index: 16, kind: input, shape index: {}]
  %s17 = inlined_call_operand.vmem [shape: f32[1,32], index: 17, kind: input, shape index: {}]
  %s18 = inlined_call_operand.hbm [shape: f32[2,8,32], index: 18, kind: output, shape index: {}]
  %s19 = sld [smem:[#allocation0]]
  $region125: #{tpu_custom_call.1} parent=0
    _
  %s21 = ssub.s32 1, %s19
  %s22 = scalar_select 0, %s21, %s19
  %24 = dma.hbm_to_smem %s0, 16, [#allocation3], [#allocation2]
  %25 = dma.done [#allocation2], 16
  %26 = sfence
  $region1: #{tpu_custom_call.1} parent=0
    #allocation4 [shape = 'u8[8192]{0}', space=vmem, size = 0x2000, scoped, tag = 'input window, operand 4, single buffered']
    #allocation5 [shape = 's32[2]{0}', space=sflag, size = 0x8, scoped, tag = 'scoped memory for tpu_custom_call.1']
    #allocation6 [shape = 's32[2]{0}', space=sflag, size = 0x8, scoped, tag = 'scoped memory for tpu_custom_call.1']
    #allocation7 [shape = 'u8[8192]{0}', space=vmem, size = 0x2000, scoped, tag = 'input window, operand 5, single buffered']
    #allocation8 [shape = 's32[1]{0}', space=sflag, size = 0x4, scoped, tag = 'scoped memory for tpu_custom_call.1']
    #allocation9 [shape = 'u8[8192]{0}', space=vmem, size = 0x2000, scoped, tag = 'input window, operand 6, single buffered']
    #allocation10 [shape = 'u8[8192]{0}', space=vmem, size = 0x2000, scoped, tag = 'input window, operand 7, single buffered']
    #allocation11 [shape = 's32[1]{0}', space=sflag, size = 0x4, scoped, tag = 'scoped memory for tpu_custom_call.1']
    #allocation12 [shape = 'u8[512]{0}', space=vmem, size = 0x400, scoped, tag = 'input window, operand 8, single buffered']
    #allocation13 [shape = 'u8[512]{0}', space=vmem, size = 0x400, scoped, tag = 'input window, operand 9, single buffered']
    #allocation14 [shape = 's32[1]{0}', space=sflag, size = 0x4, scoped, tag = 'scoped memory for tpu_custom_call.1']
    #allocation15 [shape = 'u8[8192]{0}', space=vmem, size = 0x2000, scoped, tag = 'output window, operand 0']
    %27 = vsyncpa [#allocation5], 0
    %28 = vsyncpa [#allocation8], 0
    %29 = vsyncpa [#allocation11], 0
    %30 = vsyncpa [#allocation14], 0
    %31 = vsyncpa [#allocation6], 0
    %s32 = scalar_lea.sflag [#allocation6], 1
    %33 = vsyncpa %s32, 0
    loop: start=0, step=1, limit=4
    $region2: #{tpu_custom_call.1} parent=1 // loop_pre_header
      _
    $region3: #{tpu_custom_call.1} parent=1 // loop_header
      %s35 = sphi 0, %s39
      %p36 = scmp.ge.s32.totalorder %s35, 4
      %s45 = sphi 0, %s47
      %s48 = sphi 0, %s45
      %s49 = sphi 0, %s48
      %s65 = sphi 0, %s49
      %s71 = sphi 0, %s73
      %s74 = sphi 0, %s71
      %s75 = sphi 0, %s74
      %s91 = sphi 0, %s75
      %s95 = sphi 0, %s95
      %s97 = sphi 0, %s95
      %s98 = sphi 0, %s97
      %s112 = sphi 0, %s98
      %s116 = sphi 0, %s116
      %s118 = sphi 0, %s116
      %s119 = sphi 0, %s118
      %s133 = sphi 0, %s119
      %s137 = sphi 0, %s137
      %s139 = sphi 0, %s137
      %s140 = sphi 0, %s139
      %s154 = sphi 0, %s140
      %s158 = sphi 0, %s158
      %s160 = sphi 0, %s158
      %s161 = sphi 0, %s160
      %s175 = sphi 0, %s161
      %s179 = sphi 0, %s179
      %s181 = sphi 0, %s179
      %s182 = sphi 0, %s181
      %s196 = sphi 0, %s182
      %s200 = sphi 0, %s200
      %s202 = sphi 0, %s200
      %s203 = sphi 0, %s202
      %s217 = sphi 0, %s203
      %s221 = sphi 0, %s221
      %s223 = sphi 0, %s221
      %s224 = sphi 0, %s223
      %s238 = sphi 0, %s224
      %s242 = sphi 0, %s242
      %s244 = sphi 0, %s242
      %s245 = sphi 0, %s244
      %s259 = sphi 0, %s245
      %s263 = sphi 0, %s263
      %s265 = sphi 0, %s263
      %s266 = sphi 0, %s265
      %s280 = sphi 0, %s266
      %s284 = sphi 0, %s284
      %s286 = sphi 0, %s284
      %s287 = sphi 0, %s286
      %s301 = sphi 0, %s287
      %s305 = sphi 0, %s305
      %s307 = sphi 0, %s305
      %s308 = sphi 0, %s307
      %s322 = sphi 0, %s308
      %s326 = sphi 0, %s326
      %s328 = sphi 0, %s326
      %s329 = sphi 0, %s328
      %s343 = sphi 0, %s329
      %s347 = sphi 0, %s347
      %s349 = sphi 0, %s347
      %s350 = sphi 0, %s349
      %s364 = sphi 0, %s350
      %s368 = sphi 0, %s368
      %s370 = sphi 0, %s368
      %s371 = sphi 0, %s370
      %s385 = sphi 0, %s371
      %s389 = sphi 0, %s389
      %s391 = sphi 0, %s389
      %s392 = sphi 0, %s391
      %s406 = sphi 0, %s392
      %s412 = sphi 0, %s414
      %s415 = sphi 0, %s412
      %s416 = sphi 0, %s415
      %s432 = sphi 0, %s416
    $region4: #{tpu_custom_call.1} parent=1 // loop_header_branch
      %38 = sbr.rel (%p36) target = $region8
    $region5: #{tpu_custom_call.1} parent=1 // loop_body
      %s40 = ssub.s32 %s35, 1
      %s41 = ssub.s32 %s35, 2
      %s42 = sadd.s32 %s35, 1
      %s43 = ssub.s32 %s35, %s42
      %p44 = scmp.eq.s32.totalorder %s43, 0
      %s46 = sadd.s32 %s45, 1
      %s47 = scalar_select %p44, %s45, %s46
      %p50 = pneg %p44
      %p51 = scmp.eq.s32.totalorder %s35, 1
      %p52 = por %p50, %p51
      %p53 = scmp.ne.s32.totalorder %s45, %s48
      %p54 = scmp.eq.s32.totalorder %s35, 0
      %p55 = por %p53, %p54
      %p56 = scmp.ne.s32.totalorder %s45, %s48
      %p57 = scmp.eq.s32.totalorder %s40, 1
      %p58 = por %p56, %p57
      %p59 = scmp.ne.s32.totalorder %s48, %s49
      %p60 = scmp.eq.s32.totalorder %s40, 0
      %p61 = por %p59, %p60
      %p62 = scmp.ne.s32.totalorder %s48, %s49
      %p63 = scmp.eq.s32.totalorder %s41, 1
      %p64 = por %p62, %p63
      %p66 = scmp.ne.s32.totalorder %s49, %s65
      %p67 = scmp.eq.s32.totalorder %s41, 0
      %p68 = por %p66, %p67
      %s69 = ssub.s32 %s35, %s42
      %p70 = scmp.eq.s32.totalorder %s69, 0
      %s72 = sadd.s32 %s71, 1
      %s73 = scalar_select %p70, %s71, %s72
      %p76 = pneg %p70
      %p77 = scmp.eq.s32.totalorder %s35, 1
      %p78 = por %p76, %p77
      %p79 = scmp.ne.s32.totalorder %s71, %s74
      %p80 = scmp.eq.s32.totalorder %s35, 0
      %p81 = por %p79, %p80
      %p82 = scmp.ne.s32.totalorder %s71, %s74
      %p83 = scmp.eq.s32.totalorder %s40, 1
      %p84 = por %p82, %p83
      %p85 = scmp.ne.s32.totalorder %s74, %s75
      %p86 = scmp.eq.s32.totalorder %s40, 0
      %p87 = por %p85, %p86
      %p88 = scmp.ne.s32.totalorder %s74, %s75
      %p89 = scmp.eq.s32.totalorder %s41, 1
      %p90 = por %p88, %p89
      %p92 = scmp.ne.s32.totalorder %s75, %s91
      %p93 = scmp.eq.s32.totalorder %s41, 0
      %p94 = por %p92, %p93
      %s96 = sadd.s32 %s95, 1
      %p99 = scmp.eq.s32.totalorder %s35, 1
      %p100 = scmp.ne.s32.totalorder %s95, %s97
      %p101 = scmp.eq.s32.totalorder %s35, 0
      %p102 = por %p100, %p101
      %p103 = scmp.ne.s32.totalorder %s95, %s97
      %p104 = scmp.eq.s32.totalorder %s40, 1
      %p105 = por %p103, %p104
      %p106 = scmp.ne.s32.totalorder %s97, %s98
      %p107 = scmp.eq.s32.totalorder %s40, 0
      %p108 = por %p106, %p107
      %p109 = scmp.ne.s32.totalorder %s97, %s98
      %p110 = scmp.eq.s32.totalorder %s41, 1
      %p111 = por %p109, %p110
      %p113 = scmp.ne.s32.totalorder %s98, %s112
      %p114 = scmp.eq.s32.totalorder %s41, 0
      %p115 = por %p113, %p114
      %s117 = sadd.s32 %s116, 1
      %p120 = scmp.eq.s32.totalorder %s35, 1
      %p121 = scmp.ne.s32.totalorder %s116, %s118
      %p122 = scmp.eq.s32.totalorder %s35, 0
      %p123 = por %p121, %p122
      %p124 = scmp.ne.s32.totalorder %s116, %s118
      %p125 = scmp.eq.s32.totalorder %s40, 1
      %p126 = por %p124, %p125
      %p127 = scmp.ne.s32.totalorder %s118, %s119
      %p128 = scmp.eq.s32.totalorder %s40, 0
      %p129 = por %p127, %p128
      %p130 = scmp.ne.s32.totalorder %s118, %s119
      %p131 = scmp.eq.s32.totalorder %s41, 1
      %p132 = por %p130, %p131
      %p134 = scmp.ne.s32.totalorder %s119, %s133
      %p135 = scmp.eq.s32.totalorder %s41, 0
      %p136 = por %p134, %p135
      %s138 = sadd.s32 %s137, 1
      %p141 = scmp.eq.s32.totalorder %s35, 1
      %p142 = scmp.ne.s32.totalorder %s137, %s139
      %p143 = scmp.eq.s32.totalorder %s35, 0
      %p144 = por %p142, %p143
      %p145 = scmp.ne.s32.totalorder %s137, %s139
      %p146 = scmp.eq.s32.totalorder %s40, 1
      %p147 = por %p145, %p146
      %p148 = scmp.ne.s32.totalorder %s139, %s140
      %p149 = scmp.eq.s32.totalorder %s40, 0
      %p150 = por %p148, %p149
      %p151 = scmp.ne.s32.totalorder %s139, %s140
      %p152 = scmp.eq.s32.totalorder %s41, 1
      %p153 = por %p151, %p152
      %p155 = scmp.ne.s32.totalorder %s140, %s154
      %p156 = scmp.eq.s32.totalorder %s41, 0
      %p157 = por %p155, %p156
      %s159 = sadd.s32 %s158, 1
      %p162 = scmp.eq.s32.totalorder %s35, 1
      %p163 = scmp.ne.s32.totalorder %s158, %s160
      %p164 = scmp.eq.s32.totalorder %s35, 0
      %p165 = por %p163, %p164
      %p166 = scmp.ne.s32.totalorder %s158, %s160
      %p167 = scmp.eq.s32.totalorder %s40, 1
      %p168 = por %p166, %p167
      %p169 = scmp.ne.s32.totalorder %s160, %s161
      %p170 = scmp.eq.s32.totalorder %s40, 0
      %p171 = por %p169, %p170
      %p172 = scmp.ne.s32.totalorder %s160, %s161
      %p173 = scmp.eq.s32.totalorder %s41, 1
      %p174 = por %p172, %p173
      %p176 = scmp.ne.s32.totalorder %s161, %s175
      %p177 = scmp.eq.s32.totalorder %s41, 0
      %p178 = por %p176, %p177
      %s180 = sadd.s32 %s179, 1
      %p183 = scmp.eq.s32.totalorder %s35, 1
      %p184 = scmp.ne.s32.totalorder %s179, %s181
      %p185 = scmp.eq.s32.totalorder %s35, 0
      %p186 = por %p184, %p185
      %p187 = scmp.ne.s32.totalorder %s179, %s181
      %p188 = scmp.eq.s32.totalorder %s40, 1
      %p189 = por %p187, %p188
      %p190 = scmp.ne.s32.totalorder %s181, %s182
      %p191 = scmp.eq.s32.totalorder %s40, 0
      %p192 = por %p190, %p191
      %p193 = scmp.ne.s32.totalorder %s181, %s182
      %p194 = scmp.eq.s32.totalorder %s41, 1
      %p195 = por %p193, %p194
      %p197 = scmp.ne.s32.totalorder %s182, %s196
      %p198 = scmp.eq.s32.totalorder %s41, 0
      %p199 = por %p197, %p198
      %s201 = sadd.s32 %s200, 1
      %p204 = scmp.eq.s32.totalorder %s35, 1
      %p205 = scmp.ne.s32.totalorder %s200, %s202
      %p206 = scmp.eq.s32.totalorder %s35, 0
      %p207 = por %p205, %p206
      %p208 = scmp.ne.s32.totalorder %s200, %s202
      %p209 = scmp.eq.s32.totalorder %s40, 1
      %p210 = por %p208, %p209
      %p211 = scmp.ne.s32.totalorder %s202, %s203
      %p212 = scmp.eq.s32.totalorder %s40, 0
      %p213 = por %p211, %p212
      %p214 = scmp.ne.s32.totalorder %s202, %s203
      %p215 = scmp.eq.s32.totalorder %s41, 1
      %p216 = por %p214, %p215
      %p218 = scmp.ne.s32.totalorder %s203, %s217
      %p219 = scmp.eq.s32.totalorder %s41, 0
      %p220 = por %p218, %p219
      %s222 = sadd.s32 %s221, 1
      %p225 = scmp.eq.s32.totalorder %s35, 1
      %p226 = scmp.ne.s32.totalorder %s221, %s223
      %p227 = scmp.eq.s32.totalorder %s35, 0
      %p228 = por %p226, %p227
      %p229 = scmp.ne.s32.totalorder %s221, %s223
      %p230 = scmp.eq.s32.totalorder %s40, 1
      %p231 = por %p229, %p230
      %p232 = scmp.ne.s32.totalorder %s223, %s224
      %p233 = scmp.eq.s32.totalorder %s40, 0
      %p234 = por %p232, %p233
      %p235 = scmp.ne.s32.totalorder %s223, %s224
      %p236 = scmp.eq.s32.totalorder %s41, 1
      %p237 = por %p235, %p236
      %p239 = scmp.ne.s32.totalorder %s224, %s238
      %p240 = scmp.eq.s32.totalorder %s41, 0
      %p241 = por %p239, %p240
      %s243 = sadd.s32 %s242, 1
      %p246 = scmp.eq.s32.totalorder %s35, 1
      %p247 = scmp.ne.s32.totalorder %s242, %s244
      %p248 = scmp.eq.s32.totalorder %s35, 0
      %p249 = por %p247, %p248
      %p250 = scmp.ne.s32.totalorder %s242, %s244
      %p251 = scmp.eq.s32.totalorder %s40, 1
      %p252 = por %p250, %p251
      %p253 = scmp.ne.s32.totalorder %s244, %s245
      %p254 = scmp.eq.s32.totalorder %s40, 0
      %p255 = por %p253, %p254
      %p256 = scmp.ne.s32.totalorder %s244, %s245
      %p257 = scmp.eq.s32.totalorder %s41, 1
      %p258 = por %p256, %p257
      %p260 = scmp.ne.s32.totalorder %s245, %s259
      %p261 = scmp.eq.s32.totalorder %s41, 0
      %p262 = por %p260, %p261
      %s264 = sadd.s32 %s263, 1
      %p267 = scmp.eq.s32.totalorder %s35, 1
      %p268 = scmp.ne.s32.totalorder %s263, %s265
      %p269 = scmp.eq.s32.totalorder %s35, 0
      %p270 = por %p268, %p269
      %p271 = scmp.ne.s32.totalorder %s263, %s265
      %p272 = scmp.eq.s32.totalorder %s40, 1
      %p273 = por %p271, %p272
      %p274 = scmp.ne.s32.totalorder %s265, %s266
      %p275 = scmp.eq.s32.totalorder %s40, 0
      %p276 = por %p274, %p275
      %p277 = scmp.ne.s32.totalorder %s265, %s266
      %p278 = scmp.eq.s32.totalorder %s41, 1
      %p279 = por %p277, %p278
      %p281 = scmp.ne.s32.totalorder %s266, %s280
      %p282 = scmp.eq.s32.totalorder %s41, 0
      %p283 = por %p281, %p282
      %s285 = sadd.s32 %s284, 1
      %p288 = scmp.eq.s32.totalorder %s35, 1
      %p289 = scmp.ne.s32.totalorder %s284, %s286
      %p290 = scmp.eq.s32.totalorder %s35, 0
      %p291 = por %p289, %p290
      %p292 = scmp.ne.s32.totalorder %s284, %s286
      %p293 = scmp.eq.s32.totalorder %s40, 1
      %p294 = por %p292, %p293
      %p295 = scmp.ne.s32.totalorder %s286, %s287
      %p296 = scmp.eq.s32.totalorder %s40, 0
      %p297 = por %p295, %p296
      %p298 = scmp.ne.s32.totalorder %s286, %s287
      %p299 = scmp.eq.s32.totalorder %s41, 1
      %p300 = por %p298, %p299
      %p302 = scmp.ne.s32.totalorder %s287, %s301
      %p303 = scmp.eq.s32.totalorder %s41, 0
      %p304 = por %p302, %p303
      %s306 = sadd.s32 %s305, 1
      %p309 = scmp.eq.s32.totalorder %s35, 1
      %p310 = scmp.ne.s32.totalorder %s305, %s307
      %p311 = scmp.eq.s32.totalorder %s35, 0
      %p312 = por %p310, %p311
      %p313 = scmp.ne.s32.totalorder %s305, %s307
      %p314 = scmp.eq.s32.totalorder %s40, 1
      %p315 = por %p313, %p314
      %p316 = scmp.ne.s32.totalorder %s307, %s308
      %p317 = scmp.eq.s32.totalorder %s40, 0
      %p318 = por %p316, %p317
      %p319 = scmp.ne.s32.totalorder %s307, %s308
      %p320 = scmp.eq.s32.totalorder %s41, 1
      %p321 = por %p319, %p320
      %p323 = scmp.ne.s32.totalorder %s308, %s322
      %p324 = scmp.eq.s32.totalorder %s41, 0
      %p325 = por %p323, %p324
      %s327 = sadd.s32 %s326, 1
      %p330 = scmp.eq.s32.totalorder %s35, 1
      %p331 = scmp.ne.s32.totalorder %s326, %s328
      %p332 = scmp.eq.s32.totalorder %s35, 0
      %p333 = por %p331, %p332
      %p334 = scmp.ne.s32.totalorder %s326, %s328
      %p335 = scmp.eq.s32.totalorder %s40, 1
      %p336 = por %p334, %p335
      %p337 = scmp.ne.s32.totalorder %s328, %s329
      %p338 = scmp.eq.s32.totalorder %s40, 0
      %p339 = por %p337, %p338
      %p340 = scmp.ne.s32.totalorder %s328, %s329
      %p341 = scmp.eq.s32.totalorder %s41, 1
      %p342 = por %p340, %p341
      %p344 = scmp.ne.s32.totalorder %s329, %s343
      %p345 = scmp.eq.s32.totalorder %s41, 0
      %p346 = por %p344, %p345
      %s348 = sadd.s32 %s347, 1
      %p351 = scmp.eq.s32.totalorder %s35, 1
      %p352 = scmp.ne.s32.totalorder %s347, %s349
      %p353 = scmp.eq.s32.totalorder %s35, 0
      %p354 = por %p352, %p353
      %p355 = scmp.ne.s32.totalorder %s347, %s349
      %p356 = scmp.eq.s32.totalorder %s40, 1
      %p357 = por %p355, %p356
      %p358 = scmp.ne.s32.totalorder %s349, %s350
      %p359 = scmp.eq.s32.totalorder %s40, 0
      %p360 = por %p358, %p359
      %p361 = scmp.ne.s32.totalorder %s349, %s350
      %p362 = scmp.eq.s32.totalorder %s41, 1
      %p363 = por %p361, %p362
      %p365 = scmp.ne.s32.totalorder %s350, %s364
      %p366 = scmp.eq.s32.totalorder %s41, 0
      %p367 = por %p365, %p366
      %s369 = sadd.s32 %s368, 1
      %p372 = scmp.eq.s32.totalorder %s35, 1
      %p373 = scmp.ne.s32.totalorder %s368, %s370
      %p374 = scmp.eq.s32.totalorder %s35, 0
      %p375 = por %p373, %p374
      %p376 = scmp.ne.s32.totalorder %s368, %s370
      %p377 = scmp.eq.s32.totalorder %s40, 1
      %p378 = por %p376, %p377
      %p379 = scmp.ne.s32.totalorder %s370, %s371
      %p380 = scmp.eq.s32.totalorder %s40, 0
      %p381 = por %p379, %p380
      %p382 = scmp.ne.s32.totalorder %s370, %s371
      %p383 = scmp.eq.s32.totalorder %s41, 1
      %p384 = por %p382, %p383
      %p386 = scmp.ne.s32.totalorder %s371, %s385
      %p387 = scmp.eq.s32.totalorder %s41, 0
      %p388 = por %p386, %p387
      %s390 = sadd.s32 %s389, 1
      %p393 = scmp.eq.s32.totalorder %s35, 1
      %p394 = scmp.ne.s32.totalorder %s389, %s391
      %p395 = scmp.eq.s32.totalorder %s35, 0
      %p396 = por %p394, %p395
      %p397 = scmp.ne.s32.totalorder %s389, %s391
      %p398 = scmp.eq.s32.totalorder %s40, 1
      %p399 = por %p397, %p398
      %p400 = scmp.ne.s32.totalorder %s391, %s392
      %p401 = scmp.eq.s32.totalorder %s40, 0
      %p402 = por %p400, %p401
      %p403 = scmp.ne.s32.totalorder %s391, %s392
      %p404 = scmp.eq.s32.totalorder %s41, 1
      %p405 = por %p403, %p404
      %p407 = scmp.ne.s32.totalorder %s392, %s406
      %p408 = scmp.eq.s32.totalorder %s41, 0
      %p409 = por %p407, %p408
      %s410 = ssub.s32 %s35, %s42
      %p411 = scmp.eq.s32.totalorder %s410, 0
      %s413 = sadd.s32 %s412, 1
      %s414 = scalar_select %p411, %s412, %s413
      %p417 = pneg %p411
      %p418 = scmp.eq.s32.totalorder %s35, 1
      %p419 = por %p417, %p418
      %p420 = scmp.ne.s32.totalorder %s412, %s415
      %p421 = scmp.eq.s32.totalorder %s35, 0
      %p422 = por %p420, %p421
      %p423 = scmp.ne.s32.totalorder %s412, %s415
      %p424 = scmp.eq.s32.totalorder %s40, 1
      %p425 = por %p423, %p424
      %p426 = scmp.ne.s32.totalorder %s415, %s416
      %p427 = scmp.eq.s32.totalorder %s40, 0
      %p428 = por %p426, %p427
      %p429 = scmp.ne.s32.totalorder %s415, %s416
      %p430 = scmp.eq.s32.totalorder %s41, 1
      %p431 = por %p429, %p430
      %p433 = scmp.ne.s32.totalorder %s416, %s432
      %p434 = scmp.eq.s32.totalorder %s41, 0
      %p435 = por %p433, %p434
      %p436 = scmp.le.s32.totalorder 1, %s35
      %p437 = scmp.lt.s32.totalorder %s35, 3
      %p438 = pnand %p436, %p437
      %p439 = pneg %p438
      // Predicated region
      $region9: #{tpu_custom_call.1} parent=5 // pred_check
        _
      $region10: #{tpu_custom_call.1} parent=5 // pred_check_branch
        %441 = sbr.rel (%p438) target = $region12
      $region11: #{tpu_custom_call.1} parent=5 // pred_region
        %s442 = ssub.s32 %s35, 1
        // Predicated region
        $region13: #{tpu_custom_call.1} parent=11 // pred_check
          %p443 = pneg %p108
        $region14: #{tpu_custom_call.1} parent=11 // pred_check_branch
          %445 = sbr.rel (%p443) target = $region16
        $region15: #{tpu_custom_call.1} parent=11 // pred_region
          _
        $region16: #{tpu_custom_call.1} parent=11 // pred_fallthru
          _
        // Predicated region
        $region17: #{tpu_custom_call.1} parent=11 // pred_check
          %p446 = pneg %p129
        $region18: #{tpu_custom_call.1} parent=11 // pred_check_branch
          %448 = sbr.rel (%p446) target = $region20
        $region19: #{tpu_custom_call.1} parent=11 // pred_region
          %s450 = ssub.s32 256, 256
          %451 = vsyncadd [#allocation5], %s450
          %s452 = sshll.u32 [#allocation4], 4
          %s453 = int_to_ptr.vmem [resolvable:$true] %s452
          %458 = dma.hbm_to_vmem [thread:$0]  %s4, 256, %s453, [#allocation5], 64, 64, 4
        $region20: #{tpu_custom_call.1} parent=11 // pred_fallthru
          _
        // Predicated region
        $region21: #{tpu_custom_call.1} parent=11 // pred_check
          %p459 = pneg %p150
        $region22: #{tpu_custom_call.1} parent=11 // pred_check_branch
          %461 = sbr.rel (%p459) target = $region24
        $region23: #{tpu_custom_call.1} parent=11 // pred_region
          %s463 = ssub.s32 256, 256
          %464 = vsyncadd [#allocation8], %s463
          %s465 = sshll.u32 [#allocation7], 4
          %s466 = int_to_ptr.vmem [resolvable:$true] %s465
          %471 = dma.hbm_to_vmem [thread:$0]  %s5, 256, %s466, [#allocation8], 64, 64, 4
        $region24: #{tpu_custom_call.1} parent=11 // pred_fallthru
          _
        // Predicated region
        $region25: #{tpu_custom_call.1} parent=11 // pred_check
          %p472 = pneg %p171
        $region26: #{tpu_custom_call.1} parent=11 // pred_check_branch
          %474 = sbr.rel (%p472) target = $region28
        $region27: #{tpu_custom_call.1} parent=11 // pred_region
          %s476 = ssub.s32 256, 256
          %477 = vsyncadd [#allocation8], %s476
          %s478 = sshll.u32 [#allocation9], 4
          %s479 = int_to_ptr.vmem [resolvable:$true] %s478
          %484 = dma.hbm_to_vmem [thread:$0]  %s6, 256, %s479, [#allocation8], 64, 64, 4
        $region28: #{tpu_custom_call.1} parent=11 // pred_fallthru
          _
        // Predicated region
        $region29: #{tpu_custom_call.1} parent=11 // pred_check
          %p485 = pneg %p192
        $region30: #{tpu_custom_call.1} parent=11 // pred_check_branch
          %487 = sbr.rel (%p485) target = $region32
        $region31: #{tpu_custom_call.1} parent=11 // pred_region
          %s489 = ssub.s32 256, 256
          %490 = vsyncadd [#allocation11], %s489
          %s491 = sshll.u32 [#allocation10], 4
          %s492 = int_to_ptr.vmem [resolvable:$true] %s491
          %497 = dma.hbm_to_vmem [thread:$0]  %s7, 256, %s492, [#allocation11], 64, 64, 4
        $region32: #{tpu_custom_call.1} parent=11 // pred_fallthru
          _
        // Predicated region
        $region33: #{tpu_custom_call.1} parent=11 // pred_check
          %p498 = pneg %p213
        $region34: #{tpu_custom_call.1} parent=11 // pred_check_branch
          %500 = sbr.rel (%p498) target = $region36
        $region35: #{tpu_custom_call.1} parent=11 // pred_region
          %s502 = ssub.s32 16, 16
          %503 = vsyncadd [#allocation11], %s502
          %s505 = sshll.u32 [#allocation12], 4
          %s506 = int_to_ptr.vmem [resolvable:$true] %s505
          %508 = dma.hbm_to_vmem [thread:$0]  %s8, 16, %s506, [#allocation11]
        $region36: #{tpu_custom_call.1} parent=11 // pred_fallthru
          _
        // Predicated region
        $region37: #{tpu_custom_call.1} parent=11 // pred_check
          %p509 = pneg %p234
        $region38: #{tpu_custom_call.1} parent=11 // pred_check_branch
          %511 = sbr.rel (%p509) target = $region40
        $region39: #{tpu_custom_call.1} parent=11 // pred_region
          %s513 = ssub.s32 16, 16
          %514 = vsyncadd [#allocation14], %s513
          %s516 = sshll.u32 [#allocation13], 4
          %s517 = int_to_ptr.vmem [resolvable:$true] %s516
          %519 = dma.hbm_to_vmem [thread:$0]  %s9, 16, %s517, [#allocation14]
        $region40: #{tpu_custom_call.1} parent=11 // pred_fallthru
          _
        // Predicated region
        $region41: #{tpu_custom_call.1} parent=11 // pred_check
          %p520 = pneg %p255
        $region42: #{tpu_custom_call.1} parent=11 // pred_check_branch
          %522 = sbr.rel (%p520) target = $region44
        $region43: #{tpu_custom_call.1} parent=11 // pred_region
          _
        $region44: #{tpu_custom_call.1} parent=11 // pred_fallthru
          _
        // Predicated region
        $region45: #{tpu_custom_call.1} parent=11 // pred_check
          %p523 = pneg %p276
        $region46: #{tpu_custom_call.1} parent=11 // pred_check_branch
          %525 = sbr.rel (%p523) target = $region48
        $region47: #{tpu_custom_call.1} parent=11 // pred_region
          _
        $region48: #{tpu_custom_call.1} parent=11 // pred_fallthru
          _
        // Predicated region
        $region49: #{tpu_custom_call.1} parent=11 // pred_check
          %p526 = pneg %p297
        $region50: #{tpu_custom_call.1} parent=11 // pred_check_branch
          %528 = sbr.rel (%p526) target = $region52
        $region51: #{tpu_custom_call.1} parent=11 // pred_region
          _
        $region52: #{tpu_custom_call.1} parent=11 // pred_fallthru
          _
        // Predicated region
        $region53: #{tpu_custom_call.1} parent=11 // pred_check
          %p529 = pneg %p318
        $region54: #{tpu_custom_call.1} parent=11 // pred_check_branch
          %531 = sbr.rel (%p529) target = $region56
        $region55: #{tpu_custom_call.1} parent=11 // pred_region
          _
        $region56: #{tpu_custom_call.1} parent=11 // pred_fallthru
          _
        // Predicated region
        $region57: #{tpu_custom_call.1} parent=11 // pred_check
          %p532 = pneg %p339
        $region58: #{tpu_custom_call.1} parent=11 // pred_check_branch
          %534 = sbr.rel (%p532) target = $region60
        $region59: #{tpu_custom_call.1} parent=11 // pred_region
          _
        $region60: #{tpu_custom_call.1} parent=11 // pred_fallthru
          _
        // Predicated region
        $region61: #{tpu_custom_call.1} parent=11 // pred_check
          %p535 = pneg %p360
        $region62: #{tpu_custom_call.1} parent=11 // pred_check_branch
          %537 = sbr.rel (%p535) target = $region64
        $region63: #{tpu_custom_call.1} parent=11 // pred_region
          _
        $region64: #{tpu_custom_call.1} parent=11 // pred_fallthru
          _
        // Predicated region
        $region65: #{tpu_custom_call.1} parent=11 // pred_check
          %p538 = pneg %p381
        $region66: #{tpu_custom_call.1} parent=11 // pred_check_branch
          %540 = sbr.rel (%p538) target = $region68
        $region67: #{tpu_custom_call.1} parent=11 // pred_region
          _
        $region68: #{tpu_custom_call.1} parent=11 // pred_fallthru
          _
        // Predicated region
        $region69: #{tpu_custom_call.1} parent=11 // pred_check
          %p541 = pneg %p402
        $region70: #{tpu_custom_call.1} parent=11 // pred_check_branch
          %543 = sbr.rel (%p541) target = $region72
        $region71: #{tpu_custom_call.1} parent=11 // pred_region
          _
        $region72: #{tpu_custom_call.1} parent=11 // pred_fallthru
          _
      $region12: #{tpu_custom_call.1} parent=5 // pred_fallthru
        _
      %p544 = scmp.lt.s32.totalorder %s35, 2
      // Predicated region
      $region73: #{tpu_custom_call.1} parent=5 // pred_check
        %p545 = pneg %p544
      $region74: #{tpu_custom_call.1} parent=5 // pred_check_branch
        %547 = sbr.rel (%p545) target = $region76
      $region75: #{tpu_custom_call.1} parent=5 // pred_region
        // Predicated region
        $region77: #{tpu_custom_call.1} parent=75 // pred_check
          %p548 = pneg %p55
        $region78: #{tpu_custom_call.1} parent=75 // pred_check_branch
          %550 = sbr.rel (%p548) target = $region80
        $region79: #{tpu_custom_call.1} parent=75 // pred_region
          %p551 = scmp.lt.s32.totalorder %s35, 1
          %s552 = scalar_select %p551, %s35, 1
          %s553 = smul.addr %s552, 8
          %s554 = scalar_lea.vmem %s1, %s553
        $region80: #{tpu_custom_call.1} parent=75 // pred_fallthru
          _
        // Predicated region
        $region81: #{tpu_custom_call.1} parent=75 // pred_check
          %p555 = pneg %p81
        $region82: #{tpu_custom_call.1} parent=75 // pred_check_branch
          %557 = sbr.rel (%p555) target = $region84
        $region83: #{tpu_custom_call.1} parent=75 // pred_region
          %p558 = scmp.lt.s32.totalorder %s35, 1
          %s559 = scalar_select %p558, %s35, 1
          %s560 = smul.addr %s559, 8
          %s561 = scalar_lea.vmem %s2, %s560
        $region84: #{tpu_custom_call.1} parent=75 // pred_fallthru
          _
      $region76: #{tpu_custom_call.1} parent=5 // pred_fallthru
        _
      %p562 = scmp.le.s32.totalorder 1, %s35
      %p563 = scmp.lt.s32.totalorder %s35, 3
      %p564 = pnand %p562, %p563
      %p565 = pneg %p564
      // Predicated region
      $region85: #{tpu_custom_call.1} parent=5 // pred_check
        _
      $region86: #{tpu_custom_call.1} parent=5 // pred_check_branch
        %567 = sbr.rel (%p564) target = $region88
      $region87: #{tpu_custom_call.1} parent=5 // pred_region
        %s568 = ssub.s32 %s35, 1
        // Predicated region
        $region89: #{tpu_custom_call.1} parent=87 // pred_check
          %p569 = pneg %p129
        $region90: #{tpu_custom_call.1} parent=87 // pred_check_branch
          %571 = sbr.rel (%p569) target = $region92
        $region91: #{tpu_custom_call.1} parent=87 // pred_region
          %572 = dma.done [#allocation5], 256
        $region92: #{tpu_custom_call.1} parent=87 // pred_fallthru
          _
        // Predicated region
        $region93: #{tpu_custom_call.1} parent=87 // pred_check
          %p573 = pneg %p150
        $region94: #{tpu_custom_call.1} parent=87 // pred_check_branch
          %575 = sbr.rel (%p573) target = $region96
        $region95: #{tpu_custom_call.1} parent=87 // pred_region
          %576 = dma.done [#allocation8], 256
        $region96: #{tpu_custom_call.1} parent=87 // pred_fallthru
          _
        // Predicated region
        $region97: #{tpu_custom_call.1} parent=87 // pred_check
          %p577 = pneg %p171
        $region98: #{tpu_custom_call.1} parent=87 // pred_check_branch
          %579 = sbr.rel (%p577) target = $region100
        $region99: #{tpu_custom_call.1} parent=87 // pred_region
          %580 = dma.done [#allocation8], 256
        $region100: #{tpu_custom_call.1} parent=87 // pred_fallthru
          _
        // Predicated region
        $region101: #{tpu_custom_call.1} parent=87 // pred_check
          %p581 = pneg %p192
        $region102: #{tpu_custom_call.1} parent=87 // pred_check_branch
          %583 = sbr.rel (%p581) target = $region104
        $region103: #{tpu_custom_call.1} parent=87 // pred_region
          %584 = dma.done [#allocation11], 256
        $region104: #{tpu_custom_call.1} parent=87 // pred_fallthru
          _
        // Predicated region
        $region105: #{tpu_custom_call.1} parent=87 // pred_check
          %p585 = pneg %p213
        $region106: #{tpu_custom_call.1} parent=87 // pred_check_branch
          %587 = sbr.rel (%p585) target = $region108
        $region107: #{tpu_custom_call.1} parent=87 // pred_region
          %588 = dma.done [#allocation11], 16
        $region108: #{tpu_custom_call.1} parent=87 // pred_fallthru
          _
        // Predicated region
        $region109: #{tpu_custom_call.1} parent=87 // pred_check
          %p589 = pneg %p234
        $region110: #{tpu_custom_call.1} parent=87 // pred_check_branch
          %591 = sbr.rel (%p589) target = $region112
        $region111: #{tpu_custom_call.1} parent=87 // pred_region
          %592 = dma.done [#allocation14], 16
        $region112: #{tpu_custom_call.1} parent=87 // pred_fallthru
          _
        %p593 = scmp.lt.s32.totalorder %s40, 1
        %s594 = scalar_select %p593, %s40, 1
        %s595 = smul.addr %s594, 8
        %s596 = scalar_lea.vmem %s1, %s595
        %p597 = pneg %p61
        %p598 = pneg %p58
        %p599 = scmp.lt.s32.totalorder %s40, 1
        %s600 = scalar_select %p599, %s40, 1
        %s601 = smul.addr %s600, 8
        %s602 = scalar_lea.vmem %s2, %s601
        %p603 = pneg %p87
        %p604 = pneg %p84
        %p605 = pneg %p108
        %p606 = pneg %p105
        %p607 = pneg %p129
        %p608 = pneg %p126
        %p609 = pneg %p150
        %p610 = pneg %p147
        %p611 = pneg %p171
        %p612 = pneg %p168
        %p613 = pneg %p192
        %p614 = pneg %p189
        %p615 = pneg %p213
        %p616 = pneg %p210
        %p617 = pneg %p234
        %p618 = pneg %p231
        %p619 = pneg %p255
        %p620 = pneg %p252
        %p621 = pneg %p276
        %p622 = pneg %p273
        %p623 = pneg %p297
        %p624 = pneg %p294
        %p625 = pneg %p318
        %p626 = pneg %p315
        %p627 = pneg %p339
        %p628 = pneg %p336
        %p629 = pneg %p360
        %p630 = pneg %p357
        %p631 = pneg %p381
        %p632 = pneg %p378
        %p633 = pneg %p402
        %p634 = pneg %p399
        %p635 = pneg %p428
        %p636 = pneg %p425
        %s637 = sand.u32 %s415, 1
        %s638 = scalar_lea.sflag [#allocation6], %s637
        %s639 = sand.u32 %s415, 1
        %s640 = smul.addr %s639, 8
        %s641 = scalar_lea.vmem [#allocation15], %s640
        %p642 = scmp.lt.s32.totalorder %s40, 1
        %s643 = scalar_select %p642, %s40, 1
        %s644 = smul.addr %s643, 8
        %s645 = scalar_lea.vmem %s1, %s644
        %p646 = scmp.lt.s32.totalorder %s40, 1
        %s647 = scalar_select %p646, %s40, 1
        %s648 = smul.addr %s647, 8
        %s649 = scalar_lea.vmem %s2, %s648
        %v651 = vld [vmem:[%s645] sm:$0xff]
        %v652 = vld [vmem:[%s649] sm:$0xff]
        %v653 = vpack.c.bf16 %v651, %v651
        %v654 = vld [vmem:[%s3] sm:$0xf]
        %v655 = vld [vmem:[%s3 + $0x4] sm:$0xf]
        %v656 = vld [vmem:[%s3 + $0x8] sm:$0xf]
        %v657 = vld [vmem:[%s3 + $0xc] sm:$0xf]
        %v662 = vunpack.c.l.b16 %v654
        %v663 = vunpack.c.l.b16 %v655
        %v664 = vunpack.c.l.b16 %v656
        %v665 = vunpack.c.l.b16 %v657
        %v666 = vpack.c.b16 %v663, %v662
        %v667 = vpack.c.b16 %v665, %v664
        %vm670 = vcmask 261120
        %v672 = vsel %vm670, %v653, 0
        %674 = vmatprep.subr.bf16.mxu0 0
        %675 = vmatpush1.bf16.msra.mxu0 0
        %676 = vmatprep.subr.bf16.mxu0 0
        %677 = vmatpush1.bf16.msra.mxu0 0
        %678 = vmatprep.subr.bf16.mxu0 0
        %679 = vmatpush1.bf16.msra.mxu0 0
        %680 = vmatprep.subr.bf16.mxu0 0
        %681 = vmatpush1.bf16.msra.mxu0 0
        %682 = vmatprep.subr.bf16.mxu0 0
        %683 = vmatpush1.bf16.msra.mxu0 0
        %684 = vmatprep.subr.bf16.mxu0 0
        %685 = vmatpush1.bf16.msra.mxu0 0
        %686 = vmatprep.subr.bf16.mxu0 0
        %687 = vmatpush1.bf16.msra.mxu0 %v667
        %688 = vmatprep.subr.bf16.mxu0 0
        %689 = vmatpush1.bf16.msra.mxu0 %v666
        %690 = vmatprep.subr.bf16.mxu0 0
        %691 = vmatpush2.bf16.msra.mxu0 0
        %692 = vmatprep.subr.bf16.mxu0 0
        %693 = vmatpush2.bf16.msra.mxu0 0
        %694 = vmatprep.subr.bf16.mxu0 0
        %695 = vmatpush2.bf16.msra.mxu0 0
        %696 = vmatprep.subr.bf16.mxu0 0
        %697 = vmatpush2.bf16.msra.mxu0 0
        %698 = vmatprep.subr.bf16.mxu0 0
        %699 = vmatpush2.bf16.msra.mxu0 0
        %700 = vmatprep.subr.bf16.mxu0 0
        %701 = vmatpush2.bf16.msra.mxu0 0
        %702 = vmatprep.subr.bf16.mxu0 0
        %703 = vmatpush2.bf16.msra.mxu0 0
        %704 = vmatprep.subr.bf16.mxu0 0
        %705 = vmatpush2.bf16.msra.mxu0 0
        %706 = vmatprep.mubr.bf16.mxu0 0
        %707 = vmatmul.mubr.bf16.gmra.mxu0 %v672
        %v708 = vpop.f32.mrf.mxu0
        %v709 = vadd.f32 0.0, %v708
        %v710 = vpop.f32.mrf.mxu0
        %v711 = vpop.f32.mrf.mxu0
        %v712 = vpop.f32.mrf.mxu0
        %713 = vdwg.mxu0
        %v714 = vpack.c.bf16 %v709, %v709
        %716 = vrot.lane.b32.xlu0 %v714, 96
        %v717 = vpop.permute.xlu0 %716
        %vm718 = vcmask 64512
        %v720 = vsel %vm718, %v714, 0
        %v723 = vsel %vm718, %v717, 0
        %725 = vmatprep.subr.bf16.mxu0 0
        %726 = vmatpush1.bf16.xpose.msra.mxu0 0
        %727 = vmatprep.subr.bf16.mxu0 0
        %728 = vmatpush1.bf16.xpose.msra.mxu0 0
        %729 = vmatprep.subr.bf16.mxu0 0
        %730 = vmatpush1.bf16.xpose.msra.mxu0 0
        %731 = vmatprep.subr.bf16.mxu0 0
        %732 = vmatpush1.bf16.xpose.msra.mxu0 0
        %733 = vmatprep.subr.bf16.mxu0 0
        %734 = vmatpush1.bf16.xpose.msra.mxu0 0
        %735 = vmatprep.subr.bf16.mxu0 0
        %736 = vmatpush1.bf16.xpose.msra.mxu0 0
        %737 = vmatprep.subr.bf16.mxu0 0
        %738 = vmatpush1.bf16.xpose.msra.mxu0 0
        %739 = vmatprep.subr.bf16.mxu0 0
        %740 = vmatpush1.bf16.xpose.msra.mxu0 %v723
        %741 = vmatprep.subr.bf16.mxu0 0
        %742 = vmatpush2.bf16.xpose.msra.mxu0 0
        %743 = vmatprep.subr.bf16.mxu0 0
        %744 = vmatpush2.bf16.xpose.msra.mxu0 0
        %745 = vmatprep.subr.bf16.mxu0 0
        %746 = vmatpush2.bf16.xpose.msra.mxu0 0
        %747 = vmatprep.subr.bf16.mxu0 0
        %748 = vmatpush2.bf16.xpose.msra.mxu0 0
        %749 = vmatprep.subr.bf16.mxu0 0
        %750 = vmatpush2.bf16.xpose.msra.mxu0 0
        %751 = vmatprep.subr.bf16.mxu0 0
        %752 = vmatpush2.bf16.xpose.msra.mxu0 0
        %753 = vmatprep.subr.bf16.mxu0 0
        %754 = vmatpush2.bf16.xpose.msra.mxu0 0
        %755 = vmatprep.subr.bf16.mxu0 0
        %756 = vmatpush2.bf16.xpose.msra.mxu0 0
        %757 = vmatprep.mubr.bf16.mxu0 0
        %758 = vmatmul.mubr.bf16.gmra.mxu0 %v720
        %v759 = vpop.f32.mrf.mxu0
        %v760 = vadd.f32 0.0, %v759
        %v761 = vpop.f32.mrf.mxu0
        %v762 = vpop.f32.mrf.mxu0
        %v763 = vpop.f32.mrf.mxu0
        %764 = vdwg.mxu0
        %v765 = vsel %vm718, %v760, -inf
        %766 = vmax.xlane.f32.xlu0 %v765
        %v767 = vpop.xlane.xlu0 %766
        %v768 = vsub.f32 %v760, %v767
        %v769 = vmul.f32 %v768, 1.442695
        %v770 = vpow.pop %v769
        %v771 = vsel %vm718, %v770, 0.0
        %772 = vadd.xlane.f32.xlu0 %v771
        %v773 = vpop.xlane.xlu0 %772
        %v774 = vrcp.pop %v773
        %v775 = vmul.f32 %v770, %v774
        %v776 = vpack.c.bf16 %v775, %v775
        %777 = vrot.lane.b32.xlu0 %v714, 64
        %v778 = vpop.permute.xlu0 %777
        %v780 = vsel %vm718, %v776, 0
        %vm782 = vcmask 1043456
        %v784 = vsel %vm782, %v778, 0
        %786 = vmatprep.subr.bf16.mxu0 0
        %787 = vmatpush1.bf16.msra.mxu0 0
        %788 = vmatprep.subr.bf16.mxu0 0
        %789 = vmatpush1.bf16.msra.mxu0 0
        %790 = vmatprep.subr.bf16.mxu0 0
        %791 = vmatpush1.bf16.msra.mxu0 0
        %792 = vmatprep.subr.bf16.mxu0 0
        %793 = vmatpush1.bf16.msra.mxu0 0
        %794 = vmatprep.subr.bf16.mxu0 0
        %795 = vmatpush1.bf16.msra.mxu0 0
        %796 = vmatprep.subr.bf16.mxu0 0
        %797 = vmatpush1.bf16.msra.mxu0 0
        %798 = vmatprep.subr.bf16.mxu0 0
        %799 = vmatpush1.bf16.msra.mxu0 0
        %800 = vmatprep.subr.bf16.mxu0 0
        %801 = vmatpush1.bf16.msra.mxu0 %v784
        %802 = vmatprep.subr.bf16.mxu0 0
        %803 = vmatpush2.bf16.msra.mxu0 0
        %804 = vmatprep.subr.bf16.mxu0 0
        %805 = vmatpush2.bf16.msra.mxu0 0
        %806 = vmatprep.subr.bf16.mxu0 0
        %807 = vmatpush2.bf16.msra.mxu0 0
        %808 = vmatprep.subr.bf16.mxu0 0
        %809 = vmatpush2.bf16.msra.mxu0 0
        %810 = vmatprep.subr.bf16.mxu0 0
        %811 = vmatpush2.bf16.msra.mxu0 0
        %812 = vmatprep.subr.bf16.mxu0 0
        %813 = vmatpush2.bf16.msra.mxu0 0
        %814 = vmatprep.subr.bf16.mxu0 0
        %815 = vmatpush2.bf16.msra.mxu0 0
        %816 = vmatprep.subr.bf16.mxu0 0
        %817 = vmatpush2.bf16.msra.mxu0 0
        %818 = vmatprep.mubr.bf16.mxu0 0
        %819 = vmatmul.mubr.bf16.gmra.mxu0 %v780
        %v820 = vpop.f32.mrf.mxu0
        %v821 = vadd.f32 0.0, %v820
        %v822 = vpop.f32.mrf.mxu0
        %v823 = vpop.f32.mrf.mxu0
        %v824 = vpop.f32.mrf.mxu0
        %825 = vdwg.mxu0
        %826 = vrot.lane.b32.xlu0 %v714, 120
        %v827 = vpop.permute.xlu0 %826
        %828 = vrot.lane.b32.xlu0 %v714, 88
        %v829 = vpop.permute.xlu0 %828
        %v831 = vsel %vm718, %v827, 0
        %v834 = vsel %vm718, %v829, 0
        %836 = vmatprep.subr.bf16.mxu0 0
        %837 = vmatpush1.bf16.xpose.msra.mxu0 0
        %838 = vmatprep.subr.bf16.mxu0 0
        %839 = vmatpush1.bf16.xpose.msra.mxu0 0
        %840 = vmatprep.subr.bf16.mxu0 0
        %841 = vmatpush1.bf16.xpose.msra.mxu0 0
        %842 = vmatprep.subr.bf16.mxu0 0
        %843 = vmatpush1.bf16.xpose.msra.mxu0 0
        %844 = vmatprep.subr.bf16.mxu0 0
        %845 = vmatpush1.bf16.xpose.msra.mxu0 0
        %846 = vmatprep.subr.bf16.mxu0 0
        %847 = vmatpush1.bf16.xpose.msra.mxu0 0
        %848 = vmatprep.subr.bf16.mxu0 0
        %849 = vmatpush1.bf16.xpose.msra.mxu0 0
        %850 = vmatprep.subr.bf16.mxu0 0
        %851 = vmatpush1.bf16.xpose.msra.mxu0 %v834
        %852 = vmatprep.subr.bf16.mxu0 0
        %853 = vmatpush2.bf16.xpose.msra.mxu0 0
        %854 = vmatprep.subr.bf16.mxu0 0
        %855 = vmatpush2.bf16.xpose.msra.mxu0 0
        %856 = vmatprep.subr.bf16.mxu0 0
        %857 = vmatpush2.bf16.xpose.msra.mxu0 0
        %858 = vmatprep.subr.bf16.mxu0 0
        %859 = vmatpush2.bf16.xpose.msra.mxu0 0
        %860 = vmatprep.subr.bf16.mxu0 0
        %861 = vmatpush2.bf16.xpose.msra.mxu0 0
        %862 = vmatprep.subr.bf16.mxu0 0
        %863 = vmatpush2.bf16.xpose.msra.mxu0 0
        %864 = vmatprep.subr.bf16.mxu0 0
        %865 = vmatpush2.bf16.xpose.msra.mxu0 0
        %866 = vmatprep.subr.bf16.mxu0 0
        %867 = vmatpush2.bf16.xpose.msra.mxu0 0
        %868 = vmatprep.mubr.bf16.mxu0 0
        %869 = vmatmul.mubr.bf16.gmra.mxu0 %v831
        %v870 = vpop.f32.mrf.mxu0
        %v871 = vadd.f32 0.0, %v870
        %v872 = vpop.f32.mrf.mxu0
        %v873 = vpop.f32.mrf.mxu0
        %v874 = vpop.f32.mrf.mxu0
        %875 = vdwg.mxu0
        %v876 = vsel %vm718, %v871, -inf
        %877 = vmax.xlane.f32.xlu0 %v876
        %v878 = vpop.xlane.xlu0 %877
        %v879 = vsub.f32 %v871, %v878
        %v880 = vmul.f32 %v879, 1.442695
        %v881 = vpow.pop %v880
        %v882 = vsel %vm718, %v881, 0.0
        %883 = vadd.xlane.f32.xlu0 %v882
        %v884 = vpop.xlane.xlu0 %883
        %v885 = vrcp.pop %v884
        %v886 = vmul.f32 %v881, %v885
        %v887 = vpack.c.bf16 %v886, %v886
        %888 = vrot.lane.b32.xlu0 %v714, 56
        %v889 = vpop.permute.xlu0 %888
        %v891 = vsel %vm718, %v887, 0
        %v894 = vsel %vm782, %v889, 0
        %896 = vmatprep.subr.bf16.mxu0 0
        %897 = vmatpush1.bf16.msra.mxu0 0
        %898 = vmatprep.subr.bf16.mxu0 0
        %899 = vmatpush1.bf16.msra.mxu0 0
        %900 = vmatprep.subr.bf16.mxu0 0
        %901 = vmatpush1.bf16.msra.mxu0 0
        %902 = vmatprep.subr.bf16.mxu0 0
        %903 = vmatpush1.bf16.msra.mxu0 0
        %904 = vmatprep.subr.bf16.mxu0 0
        %905 = vmatpush1.bf16.msra.mxu0 0
        %906 = vmatprep.subr.bf16.mxu0 0
        %907 = vmatpush1.bf16.msra.mxu0 0
        %908 = vmatprep.subr.bf16.mxu0 0
        %909 = vmatpush1.bf16.msra.mxu0 0
        %910 = vmatprep.subr.bf16.mxu0 0
        %911 = vmatpush1.bf16.msra.mxu0 %v894
        %912 = vmatprep.subr.bf16.mxu0 0
        %913 = vmatpush2.bf16.msra.mxu0 0
        %914 = vmatprep.subr.bf16.mxu0 0
        %915 = vmatpush2.bf16.msra.mxu0 0
        %916 = vmatprep.subr.bf16.mxu0 0
        %917 = vmatpush2.bf16.msra.mxu0 0
        %918 = vmatprep.subr.bf16.mxu0 0
        %919 = vmatpush2.bf16.msra.mxu0 0
        %920 = vmatprep.subr.bf16.mxu0 0
        %921 = vmatpush2.bf16.msra.mxu0 0
        %922 = vmatprep.subr.bf16.mxu0 0
        %923 = vmatpush2.bf16.msra.mxu0 0
        %924 = vmatprep.subr.bf16.mxu0 0
        %925 = vmatpush2.bf16.msra.mxu0 0
        %926 = vmatprep.subr.bf16.mxu0 0
        %927 = vmatpush2.bf16.msra.mxu0 0
        %928 = vmatprep.mubr.bf16.mxu0 0
        %929 = vmatmul.mubr.bf16.gmra.mxu0 %v891
        %v930 = vpop.f32.mrf.mxu0
        %v931 = vadd.f32 0.0, %v930
        %v932 = vpop.f32.mrf.mxu0
        %v933 = vpop.f32.mrf.mxu0
        %v934 = vpop.f32.mrf.mxu0
        %935 = vdwg.mxu0
        %936 = vrot.lane.b32.xlu0 %v714, 112
        %v937 = vpop.permute.xlu0 %936
        %938 = vrot.lane.b32.xlu0 %v714, 80
        %v939 = vpop.permute.xlu0 %938
        %v941 = vsel %vm718, %v937, 0
        %v944 = vsel %vm718, %v939, 0
        %946 = vmatprep.subr.bf16.mxu0 0
        %947 = vmatpush1.bf16.xpose.msra.mxu0 0
        %948 = vmatprep.subr.bf16.mxu0 0
        %949 = vmatpush1.bf16.xpose.msra.mxu0 0
        %950 = vmatprep.subr.bf16.mxu0 0
        %951 = vmatpush1.bf16.xpose.msra.mxu0 0
        %952 = vmatprep.subr.bf16.mxu0 0
        %953 = vmatpush1.bf16.xpose.msra.mxu0 0
        %954 = vmatprep.subr.bf16.mxu0 0
        %955 = vmatpush1.bf16.xpose.msra.mxu0 0
        %956 = vmatprep.subr.bf16.mxu0 0
        %957 = vmatpush1.bf16.xpose.msra.mxu0 0
        %958 = vmatprep.subr.bf16.mxu0 0
        %959 = vmatpush1.bf16.xpose.msra.mxu0 0
        %960 = vmatprep.subr.bf16.mxu0 0
        %961 = vmatpush1.bf16.xpose.msra.mxu0 %v944
        %962 = vmatprep.subr.bf16.mxu0 0
        %963 = vmatpush2.bf16.xpose.msra.mxu0 0
        %964 = vmatprep.subr.bf16.mxu0 0
        %965 = vmatpush2.bf16.xpose.msra.mxu0 0
        %966 = vmatprep.subr.bf16.mxu0 0
        %967 = vmatpush2.bf16.xpose.msra.mxu0 0
        %968 = vmatprep.subr.bf16.mxu0 0
        %969 = vmatpush2.bf16.xpose.msra.mxu0 0
        %970 = vmatprep.subr.bf16.mxu0 0
        %971 = vmatpush2.bf16.xpose.msra.mxu0 0
        %972 = vmatprep.subr.bf16.mxu0 0
        %973 = vmatpush2.bf16.xpose.msra.mxu0 0
        %974 = vmatprep.subr.bf16.mxu0 0
        %975 = vmatpush2.bf16.xpose.msra.mxu0 0
        %976 = vmatprep.subr.bf16.mxu0 0
        %977 = vmatpush2.bf16.xpose.msra.mxu0 0
        %978 = vmatprep.mubr.bf16.mxu0 0
        %979 = vmatmul.mubr.bf16.gmra.mxu0 %v941
        %v980 = vpop.f32.mrf.mxu0
        %v981 = vadd.f32 0.0, %v980
        %v982 = vpop.f32.mrf.mxu0
        %v983 = vpop.f32.mrf.mxu0
        %v984 = vpop.f32.mrf.mxu0
        %985 = vdwg.mxu0
        %v986 = vsel %vm718, %v981, -inf
        %987 = vmax.xlane.f32.xlu0 %v986
        %v988 = vpop.xlane.xlu0 %987
        %v989 = vsub.f32 %v981, %v988
        %v990 = vmul.f32 %v989, 1.442695
        %v991 = vpow.pop %v990
        %v992 = vsel %vm718, %v991, 0.0
        %993 = vadd.xlane.f32.xlu0 %v992
        %v994 = vpop.xlane.xlu0 %993
        %v995 = vrcp.pop %v994
        %v996 = vmul.f32 %v991, %v995
        %v997 = vpack.c.bf16 %v996, %v996
        %998 = vrot.lane.b32.xlu0 %v714, 48
        %v999 = vpop.permute.xlu0 %998
        %v1001 = vsel %vm718, %v997, 0
        %v1004 = vsel %vm782, %v999, 0
        %1006 = vmatprep.subr.bf16.mxu0 0
        %1007 = vmatpush1.bf16.msra.mxu0 0
        %1008 = vmatprep.subr.bf16.mxu0 0
        %1009 = vmatpush1.bf16.msra.mxu0 0
        %1010 = vmatprep.subr.bf16.mxu0 0
        %1011 = vmatpush1.bf16.msra.mxu0 0
        %1012 = vmatprep.subr.bf16.mxu0 0
        %1013 = vmatpush1.bf16.msra.mxu0 0
        %1014 = vmatprep.subr.bf16.mxu0 0
        %1015 = vmatpush1.bf16.msra.mxu0 0
        %1016 = vmatprep.subr.bf16.mxu0 0
        %1017 = vmatpush1.bf16.msra.mxu0 0
        %1018 = vmatprep.subr.bf16.mxu0 0
        %1019 = vmatpush1.bf16.msra.mxu0 0
        %1020 = vmatprep.subr.bf16.mxu0 0
        %1021 = vmatpush1.bf16.msra.mxu0 %v1004
        %1022 = vmatprep.subr.bf16.mxu0 0
        %1023 = vmatpush2.bf16.msra.mxu0 0
        %1024 = vmatprep.subr.bf16.mxu0 0
        %1025 = vmatpush2.bf16.msra.mxu0 0
        %1026 = vmatprep.subr.bf16.mxu0 0
        %1027 = vmatpush2.bf16.msra.mxu0 0
        %1028 = vmatprep.subr.bf16.mxu0 0
        %1029 = vmatpush2.bf16.msra.mxu0 0
        %1030 = vmatprep.subr.bf16.mxu0 0
        %1031 = vmatpush2.bf16.msra.mxu0 0
        %1032 = vmatprep.subr.bf16.mxu0 0
        %1033 = vmatpush2.bf16.msra.mxu0 0
        %1034 = vmatprep.subr.bf16.mxu0 0
        %1035 = vmatpush2.bf16.msra.mxu0 0
        %1036 = vmatprep.subr.bf16.mxu0 0
        %1037 = vmatpush2.bf16.msra.mxu0 0
        %1038 = vmatprep.mubr.bf16.mxu0 0
        %1039 = vmatmul.mubr.bf16.gmra.mxu0 %v1001
        %v1040 = vpop.f32.mrf.mxu0
        %v1041 = vadd.f32 0.0, %v1040
        %v1042 = vpop.f32.mrf.mxu0
        %v1043 = vpop.f32.mrf.mxu0
        %v1044 = vpop.f32.mrf.mxu0
        %1045 = vdwg.mxu0
        %1046 = vrot.lane.b32.xlu0 %v714, 104
        %v1047 = vpop.permute.xlu0 %1046
        %1048 = vrot.lane.b32.xlu0 %v714, 72
        %v1049 = vpop.permute.xlu0 %1048
        %v1051 = vsel %vm718, %v1047, 0
        %v1054 = vsel %vm718, %v1049, 0
        %1056 = vmatprep.subr.bf16.mxu0 0
        %1057 = vmatpush1.bf16.xpose.msra.mxu0 0
        %1058 = vmatprep.subr.bf16.mxu0 0
        %1059 = vmatpush1.bf16.xpose.msra.mxu0 0
        %1060 = vmatprep.subr.bf16.mxu0 0
        %1061 = vmatpush1.bf16.xpose.msra.mxu0 0
        %1062 = vmatprep.subr.bf16.mxu0 0
        %1063 = vmatpush1.bf16.xpose.msra.mxu0 0
        %1064 = vmatprep.subr.bf16.mxu0 0
        %1065 = vmatpush1.bf16.xpose.msra.mxu0 0
        %1066 = vmatprep.subr.bf16.mxu0 0
        %1067 = vmatpush1.bf16.xpose.msra.mxu0 0
        %1068 = vmatprep.subr.bf16.mxu0 0
        %1069 = vmatpush1.bf16.xpose.msra.mxu0 0
        %1070 = vmatprep.subr.bf16.mxu0 0
        %1071 = vmatpush1.bf16.xpose.msra.mxu0 %v1054
        %1072 = vmatprep.subr.bf16.mxu0 0
        %1073 = vmatpush2.bf16.xpose.msra.mxu0 0
        %1074 = vmatprep.subr.bf16.mxu0 0
        %1075 = vmatpush2.bf16.xpose.msra.mxu0 0
        %1076 = vmatprep.subr.bf16.mxu0 0
        %1077 = vmatpush2.bf16.xpose.msra.mxu0 0
        %1078 = vmatprep.subr.bf16.mxu0 0
        %1079 = vmatpush2.bf16.xpose.msra.mxu0 0
        %1080 = vmatprep.subr.bf16.mxu0 0
        %1081 = vmatpush2.bf16.xpose.msra.mxu0 0
        %1082 = vmatprep.subr.bf16.mxu0 0
        %1083 = vmatpush2.bf16.xpose.msra.mxu0 0
        %1084 = vmatprep.subr.bf16.mxu0 0
        %1085 = vmatpush2.bf16.xpose.msra.mxu0 0
        %1086 = vmatprep.subr.bf16.mxu0 0
        %1087 = vmatpush2.bf16.xpose.msra.mxu0 0
        %1088 = vmatprep.mubr.bf16.mxu0 0
        %1089 = vmatmul.mubr.bf16.gmra.mxu0 %v1051
        %v1090 = vpop.f32.mrf.mxu0
        %v1091 = vadd.f32 0.0, %v1090
        %v1092 = vpop.f32.mrf.mxu0
        %v1093 = vpop.f32.mrf.mxu0
        %v1094 = vpop.f32.mrf.mxu0
        %1095 = vdwg.mxu0
        %v1096 = vsel %vm718, %v1091, -inf
        %1097 = vmax.xlane.f32.xlu0 %v1096
        %v1098 = vpop.xlane.xlu0 %1097
        %v1099 = vsub.f32 %v1091, %v1098
        %v1100 = vmul.f32 %v1099, 1.442695
        %v1101 = vpow.pop %v1100
        %v1102 = vsel %vm718, %v1101, 0.0
        %1103 = vadd.xlane.f32.xlu0 %v1102
        %v1104 = vpop.xlane.xlu0 %1103
        %v1105 = vrcp.pop %v1104
        %v1106 = vmul.f32 %v1101, %v1105
        %v1107 = vpack.c.bf16 %v1106, %v1106
        %1108 = vrot.lane.b32.xlu0 %v714, 40
        %v1109 = vpop.permute.xlu0 %1108
        %v1111 = vsel %vm718, %v1107, 0
        %v1114 = vsel %vm782, %v1109, 0
        %1116 = vmatprep.subr.bf16.mxu0 0
        %1117 = vmatpush1.bf16.msra.mxu0 0
        %1118 = vmatprep.subr.bf16.mxu0 0
        %1119 = vmatpush1.bf16.msra.mxu0 0
        %1120 = vmatprep.subr.bf16.mxu0 0
        %1121 = vmatpush1.bf16.msra.mxu0 0
        %1122 = vmatprep.subr.bf16.mxu0 0
        %1123 = vmatpush1.bf16.msra.mxu0 0
        %1124 = vmatprep.subr.bf16.mxu0 0
        %1125 = vmatpush1.bf16.msra.mxu0 0
        %1126 = vmatprep.subr.bf16.mxu0 0
        %1127 = vmatpush1.bf16.msra.mxu0 0
        %1128 = vmatprep.subr.bf16.mxu0 0
        %1129 = vmatpush1.bf16.msra.mxu0 0
        %1130 = vmatprep.subr.bf16.mxu0 0
        %1131 = vmatpush1.bf16.msra.mxu0 %v1114
        %1132 = vmatprep.subr.bf16.mxu0 0
        %1133 = vmatpush2.bf16.msra.mxu0 0
        %1134 = vmatprep.subr.bf16.mxu0 0
        %1135 = vmatpush2.bf16.msra.mxu0 0
        %1136 = vmatprep.subr.bf16.mxu0 0
        %1137 = vmatpush2.bf16.msra.mxu0 0
        %1138 = vmatprep.subr.bf16.mxu0 0
        %1139 = vmatpush2.bf16.msra.mxu0 0
        %1140 = vmatprep.subr.bf16.mxu0 0
        %1141 = vmatpush2.bf16.msra.mxu0 0
        %1142 = vmatprep.subr.bf16.mxu0 0
        %1143 = vmatpush2.bf16.msra.mxu0 0
        %1144 = vmatprep.subr.bf16.mxu0 0
        %1145 = vmatpush2.bf16.msra.mxu0 0
        %1146 = vmatprep.subr.bf16.mxu0 0
        %1147 = vmatpush2.bf16.msra.mxu0 0
        %1148 = vmatprep.mubr.bf16.mxu0 0
        %1149 = vmatmul.mubr.bf16.gmra.mxu0 %v1111
        %v1150 = vpop.f32.mrf.mxu0
        %v1151 = vadd.f32 0.0, %v1150
        %v1152 = vpop.f32.mrf.mxu0
        %v1153 = vpop.f32.mrf.mxu0
        %v1154 = vpop.f32.mrf.mxu0
        %1155 = vdwg.mxu0
        %1157 = vrot.lane.b32.xlu0 %v931, 8
        %v1158 = vpop.permute.xlu0 %1157
        %1161 = vrot.lane.b32.xlu0 %v1041, 16
        %v1162 = vpop.permute.xlu0 %1161
        %1165 = vrot.lane.b32.xlu0 %v1151, 24
        %v1166 = vpop.permute.xlu0 %1165
        %v1168 = vsel %vm718, %v821, %v1158
        %vm1169 = vcmask 130048
        %v1170 = vsel %vm1169, %v1168, %v1162
        %vm1171 = vcmask 195584
        %v1172 = vsel %vm1171, %v1170, %v1166
        %v1173 = vpack.c.bf16 %v1172, %v1172
        %v1174 = vld [vmem:[#allocation4] sm:$0xf]
        %v1175 = vld [vmem:[#allocation4 + $0x4] sm:$0xf]
        %v1176 = vld [vmem:[#allocation4 + $0x8] sm:$0xf]
        %v1177 = vld [vmem:[#allocation4 + $0xc] sm:$0xf]
        %v1182 = vunpack.c.l.b16 %v1174
        %v1183 = vunpack.c.l.b16 %v1175
        %v1184 = vunpack.c.l.b16 %v1176
        %v1185 = vunpack.c.l.b16 %v1177
        %v1186 = vpack.c.b16 %v1183, %v1182
        %v1187 = vpack.c.b16 %v1185, %v1184
        %v1191 = vsel %vm670, %v1173, 0
        %1193 = vmatprep.subr.bf16.mxu0 0
        %1194 = vmatpush1.bf16.msra.mxu0 0
        %1195 = vmatprep.subr.bf16.mxu0 0
        %1196 = vmatpush1.bf16.msra.mxu0 0
        %1197 = vmatprep.subr.bf16.mxu0 0
        %1198 = vmatpush1.bf16.msra.mxu0 0
        %1199 = vmatprep.subr.bf16.mxu0 0
        %1200 = vmatpush1.bf16.msra.mxu0 0
        %1201 = vmatprep.subr.bf16.mxu0 0
        %1202 = vmatpush1.bf16.msra.mxu0 0
        %1203 = vmatprep.subr.bf16.mxu0 0
        %1204 = vmatpush1.bf16.msra.mxu0 0
        %1205 = vmatprep.subr.bf16.mxu0 0
        %1206 = vmatpush1.bf16.msra.mxu0 %v1187
        %1207 = vmatprep.subr.bf16.mxu0 0
        %1208 = vmatpush1.bf16.msra.mxu0 %v1186
        %1209 = vmatprep.subr.bf16.mxu0 0
        %1210 = vmatpush2.bf16.msra.mxu0 0
        %1211 = vmatprep.subr.bf16.mxu0 0
        %1212 = vmatpush2.bf16.msra.mxu0 0
        %1213 = vmatprep.subr.bf16.mxu0 0
        %1214 = vmatpush2.bf16.msra.mxu0 0
        %1215 = vmatprep.subr.bf16.mxu0 0
        %1216 = vmatpush2.bf16.msra.mxu0 0
        %1217 = vmatprep.subr.bf16.mxu0 0
        %1218 = vmatpush2.bf16.msra.mxu0 0
        %1219 = vmatprep.subr.bf16.mxu0 0
        %1220 = vmatpush2.bf16.msra.mxu0 0
        %1221 = vmatprep.subr.bf16.mxu0 0
        %1222 = vmatpush2.bf16.msra.mxu0 0
        %1223 = vmatprep.subr.bf16.mxu0 0
        %1224 = vmatpush2.bf16.msra.mxu0 0
        %1225 = vmatprep.mubr.bf16.mxu0 0
        %1226 = vmatmul.mubr.bf16.gmra.mxu0 %v1191
        %v1227 = vpop.f32.mrf.mxu0
        %v1228 = vadd.f32 %v651, %v1227
        %v1229 = vpop.f32.mrf.mxu0
        %v1230 = vpop.f32.mrf.mxu0
        %v1231 = vpop.f32.mrf.mxu0
        %1232 = vdwg.mxu0
        %v1233 = vsel %vm670, %v1228, 0.0
        %1234 = vadd.xlane.f32.xlu0 %v1233
        %v1235 = vpop.xlane.xlu0 %1234
        %v1236 = vrcp.pop 32.0
        %v1237 = vmul.f32 %v1235, %v1236
        %v1238 = vsub.f32 %v1228, %v1237
        %v1239 = vmul.f32 %v1238, %v1238
        %v1240 = vsel %vm670, %v1239, 0.0
        %1241 = vadd.xlane.f32.xlu0 %v1240
        %v1242 = vpop.xlane.xlu0 %1241
        %v1243 = vmul.f32 %v1242, %v1236
        %v1244 = vadd.f32 %v1243, 1e-05
        %v1245 = vrsqrt.pop %v1244
        %v1246 = vmul.f32 %v1238, %v1245
        %v1247 = vld [vmem:[#allocation12] sm:$0x1]
        %v1249 = vlaneseq
        %v1250 = vshrl.u32 %v1249, 7
        %v1251 = vsub.s32 0, %v1250
        %v1252 = vrot.slane %v1247, %v1251
        %v1254 = vmul.f32 %v1246, %v1252
        %v1255 = vld [vmem:[#allocation13] sm:$0x1]
        %v1257 = vlaneseq
        %v1258 = vshrl.u32 %v1257, 7
        %v1259 = vsub.s32 0, %v1258
        %v1260 = vrot.slane %v1255, %v1259
        %v1262 = vadd.f32 %v1254, %v1260
        %v1263 = vpack.c.bf16 %v1262, %v1262
        %v1264 = vld [vmem:[#allocation7] sm:$0xf]
        %v1265 = vld [vmem:[#allocation7 + $0x4] sm:$0xf]
        %v1266 = vld [vmem:[#allocation7 + $0x8] sm:$0xf]
        %v1267 = vld [vmem:[#allocation7 + $0xc] sm:$0xf]
        %v1272 = vunpack.c.l.b16 %v1264
        %v1273 = vunpack.c.l.b16 %v1265
        %v1274 = vunpack.c.l.b16 %v1266
        %v1275 = vunpack.c.l.b16 %v1267
        %v1276 = vpack.c.b16 %v1273, %v1272
        %v1277 = vpack.c.b16 %v1275, %v1274
        %v1281 = vsel %vm670, %v1263, 0
        %1283 = vmatprep.subr.bf16.mxu0 0
        %1284 = vmatpush1.bf16.msra.mxu0 0
        %1285 = vmatprep.subr.bf16.mxu0 0
        %1286 = vmatpush1.bf16.msra.mxu0 0
        %1287 = vmatprep.subr.bf16.mxu0 0
        %1288 = vmatpush1.bf16.msra.mxu0 0
        %1289 = vmatprep.subr.bf16.mxu0 0
        %1290 = vmatpush1.bf16.msra.mxu0 0
        %1291 = vmatprep.subr.bf16.mxu0 0
        %1292 = vmatpush1.bf16.msra.mxu0 0
        %1293 = vmatprep.subr.bf16.mxu0 0
        %1294 = vmatpush1.bf16.msra.mxu0 0
        %1295 = vmatprep.subr.bf16.mxu0 0
        %1296 = vmatpush1.bf16.msra.mxu0 %v1277
        %1297 = vmatprep.subr.bf16.mxu0 0
        %1298 = vmatpush1.bf16.msra.mxu0 %v1276
        %1299 = vmatprep.subr.bf16.mxu0 0
        %1300 = vmatpush2.bf16.msra.mxu0 0
        %1301 = vmatprep.subr.bf16.mxu0 0
        %1302 = vmatpush2.bf16.msra.mxu0 0
        %1303 = vmatprep.subr.bf16.mxu0 0
        %1304 = vmatpush2.bf16.msra.mxu0 0
        %1305 = vmatprep.subr.bf16.mxu0 0
        %1306 = vmatpush2.bf16.msra.mxu0 0
        %1307 = vmatprep.subr.bf16.mxu0 0
        %1308 = vmatpush2.bf16.msra.mxu0 0
        %1309 = vmatprep.subr.bf16.mxu0 0
        %1310 = vmatpush2.bf16.msra.mxu0 0
        %1311 = vmatprep.subr.bf16.mxu0 0
        %1312 = vmatpush2.bf16.msra.mxu0 0
        %1313 = vmatprep.subr.bf16.mxu0 0
        %1314 = vmatpush2.bf16.msra.mxu0 0
        %1315 = vmatprep.mubr.bf16.mxu0 0
        %1316 = vmatmul.mubr.bf16.gmra.mxu0 %v1281
        %v1317 = vpop.f32.mrf.mxu0
        %v1318 = vadd.f32 0.0, %v1317
        %v1319 = vpop.f32.mrf.mxu0
        %v1320 = vpop.f32.mrf.mxu0
        %v1321 = vpop.f32.mrf.mxu0
        %1322 = vdwg.mxu0
        %v1323 = vpack.c.bf16 %v652, %v652
        %v1324 = vld [vmem:[#allocation9] sm:$0xf]
        %v1325 = vld [vmem:[#allocation9 + $0x4] sm:$0xf]
        %v1326 = vld [vmem:[#allocation9 + $0x8] sm:$0xf]
        %v1327 = vld [vmem:[#allocation9 + $0xc] sm:$0xf]
        %v1332 = vunpack.c.l.b16 %v1324
        %v1333 = vunpack.c.l.b16 %v1325
        %v1334 = vunpack.c.l.b16 %v1326
        %v1335 = vunpack.c.l.b16 %v1327
        %v1336 = vpack.c.b16 %v1333, %v1332
        %v1337 = vpack.c.b16 %v1335, %v1334
        %v1341 = vsel %vm670, %v1323, 0
        %1343 = vmatprep.subr.bf16.mxu0 0
        %1344 = vmatpush1.bf16.msra.mxu0 0
        %1345 = vmatprep.subr.bf16.mxu0 0
        %1346 = vmatpush1.bf16.msra.mxu0 0
        %1347 = vmatprep.subr.bf16.mxu0 0
        %1348 = vmatpush1.bf16.msra.mxu0 0
        %1349 = vmatprep.subr.bf16.mxu0 0
        %1350 = vmatpush1.bf16.msra.mxu0 0
        %1351 = vmatprep.subr.bf16.mxu0 0
        %1352 = vmatpush1.bf16.msra.mxu0 0
        %1353 = vmatprep.subr.bf16.mxu0 0
        %1354 = vmatpush1.bf16.msra.mxu0 0
        %1355 = vmatprep.subr.bf16.mxu0 0
        %1356 = vmatpush1.bf16.msra.mxu0 %v1337
        %1357 = vmatprep.subr.bf16.mxu0 0
        %1358 = vmatpush1.bf16.msra.mxu0 %v1336
        %1359 = vmatprep.subr.bf16.mxu0 0
        %1360 = vmatpush2.bf16.msra.mxu0 0
        %1361 = vmatprep.subr.bf16.mxu0 0
        %1362 = vmatpush2.bf16.msra.mxu0 0
        %1363 = vmatprep.subr.bf16.mxu0 0
        %1364 = vmatpush2.bf16.msra.mxu0 0
        %1365 = vmatprep.subr.bf16.mxu0 0
        %1366 = vmatpush2.bf16.msra.mxu0 0
        %1367 = vmatprep.subr.bf16.mxu0 0
        %1368 = vmatpush2.bf16.msra.mxu0 0
        %1369 = vmatprep.subr.bf16.mxu0 0
        %1370 = vmatpush2.bf16.msra.mxu0 0
        %1371 = vmatprep.subr.bf16.mxu0 0
        %1372 = vmatpush2.bf16.msra.mxu0 0
        %1373 = vmatprep.subr.bf16.mxu0 0
        %1374 = vmatpush2.bf16.msra.mxu0 0
        %1375 = vmatprep.mubr.bf16.mxu0 0
        %1376 = vmatmul.mubr.bf16.gmra.mxu0 %v1341
        %v1377 = vpop.f32.mrf.mxu0
        %v1378 = vadd.f32 0.0, %v1377
        %v1379 = vpop.f32.mrf.mxu0
        %v1380 = vpop.f32.mrf.mxu0
        %v1381 = vpop.f32.mrf.mxu0
        %1382 = vdwg.mxu0
        %v1383 = vlaneseq
        %v1384 = vand.u32 %v1383, 127
        %s1385 = smul.u32 %s40, 4
        %p1386 = scmp.lt.s32.totalorder %s1385, 0
        %s1387 = ssub.s32 0, %s1385
        %s1388 = scalar_select %p1386, %s1387, %s1385
        %s1389 = sand.u32 %s1388, 1
        %s1390 = ssub.s32 0, %s1389
        %s1391 = scalar_select %p1386, %s1390, %s1389
        %p1392 = scmp.ne.s32.totalorder %s1391, 0
        %p1393 = scmp.lt.s32.totalorder %s1391, 0
        %p1394 = pnand %p1393, %p1392
        %p1395 = pneg %p1394
        %s1396 = sadd.s32 %s1391, 2
        %s1397 = scalar_select %p1395, %s1396, %s1391
        %s1398 = sld [smem:[#allocation3 + %s1397]]
        %v1399 = vstv %s1398
        %vm1400 = vcmp.lt.s32.totalorder %v1384, %v1399
        %s1401 = sadd.s32 %s1385, 1
        %p1402 = scmp.lt.s32.totalorder %s1401, 0
        %s1403 = ssub.s32 0, %s1401
        %s1404 = scalar_select %p1402, %s1403, %s1401
        %s1405 = sand.u32 %s1404, 1
        %s1406 = ssub.s32 0, %s1405
        %s1407 = scalar_select %p1402, %s1406, %s1405
        %p1408 = scmp.ne.s32.totalorder %s1407, 0
        %p1409 = scmp.lt.s32.totalorder %s1407, 0
        %p1410 = pnand %p1409, %p1408
        %p1411 = pneg %p1410
        %s1412 = sadd.s32 %s1407, 2
        %s1413 = scalar_select %p1411, %s1412, %s1407
        %s1414 = sld [smem:[#allocation3 + %s1413]]
        %v1415 = vstv %s1414
        %vm1416 = vcmp.lt.s32.totalorder %v1384, %v1415
        %s1417 = sadd.s32 %s1385, 2
        %p1418 = scmp.lt.s32.totalorder %s1417, 0
        %s1419 = ssub.s32 0, %s1417
        %s1420 = scalar_select %p1418, %s1419, %s1417
        %s1421 = sand.u32 %s1420, 1
        %s1422 = ssub.s32 0, %s1421
        %s1423 = scalar_select %p1418, %s1422, %s1421
        %p1424 = scmp.ne.s32.totalorder %s1423, 0
        %p1425 = scmp.lt.s32.totalorder %s1423, 0
        %p1426 = pnand %p1425, %p1424
        %p1427 = pneg %p1426
        %s1428 = sadd.s32 %s1423, 2
        %s1429 = scalar_select %p1427, %s1428, %s1423
        %s1430 = sld [smem:[#allocation3 + %s1429]]
        %v1431 = vstv %s1430
        %vm1432 = vcmp.lt.s32.totalorder %v1384, %v1431
        %s1433 = sadd.s32 %s1385, 3
        %p1434 = scmp.lt.s32.totalorder %s1433, 0
        %s1435 = ssub.s32 0, %s1433
        %s1436 = scalar_select %p1434, %s1435, %s1433
        %s1437 = sand.u32 %s1436, 1
        %s1438 = ssub.s32 0, %s1437
        %s1439 = scalar_select %p1434, %s1438, %s1437
        %p1440 = scmp.ne.s32.totalorder %s1439, 0
        %p1441 = scmp.lt.s32.totalorder %s1439, 0
        %p1442 = pnand %p1441, %p1440
        %p1443 = pneg %p1442
        %s1444 = sadd.s32 %s1439, 2
        %s1445 = scalar_select %p1443, %s1444, %s1439
        %s1446 = sld [smem:[#allocation3 + %s1445]]
        %v1447 = vstv %s1446
        %vm1448 = vcmp.lt.s32.totalorder %v1384, %v1447
        %v1449 = vpack.c.bf16 %v1318, %v1318
        %v1450 = vpack.c.bf16 %v1378, %v1378
        %v1452 = vsel %vm718, %v1449, 0
        %v1455 = vsel %vm718, %v1450, 0
        %1457 = vmatprep.subr.bf16.mxu0 0
        %1458 = vmatpush1.bf16.xpose.msra.mxu0 0
        %1459 = vmatprep.subr.bf16.mxu0 0
        %1460 = vmatpush1.bf16.xpose.msra.mxu0 0
        %1461 = vmatprep.subr.bf16.mxu0 0
        %1462 = vmatpush1.bf16.xpose.msra.mxu0 0
        %1463 = vmatprep.subr.bf16.mxu0 0
        %1464 = vmatpush1.bf16.xpose.msra.mxu0 0
        %1465 = vmatprep.subr.bf16.mxu0 0
        %1466 = vmatpush1.bf16.xpose.msra.mxu0 0
        %1467 = vmatprep.subr.bf16.mxu0 0
        %1468 = vmatpush1.bf16.xpose.msra.mxu0 0
        %1469 = vmatprep.subr.bf16.mxu0 0
        %1470 = vmatpush1.bf16.xpose.msra.mxu0 0
        %1471 = vmatprep.subr.bf16.mxu0 0
        %1472 = vmatpush1.bf16.xpose.msra.mxu0 %v1455
        %1473 = vmatprep.subr.bf16.mxu0 0
        %1474 = vmatpush2.bf16.xpose.msra.mxu0 0
        %1475 = vmatprep.subr.bf16.mxu0 0
        %1476 = vmatpush2.bf16.xpose.msra.mxu0 0
        %1477 = vmatprep.subr.bf16.mxu0 0
        %1478 = vmatpush2.bf16.xpose.msra.mxu0 0
        %1479 = vmatprep.subr.bf16.mxu0 0
        %1480 = vmatpush2.bf16.xpose.msra.mxu0 0
        %1481 = vmatprep.subr.bf16.mxu0 0
        %1482 = vmatpush2.bf16.xpose.msra.mxu0 0
        %1483 = vmatprep.subr.bf16.mxu0 0
        %1484 = vmatpush2.bf16.xpose.msra.mxu0 0
        %1485 = vmatprep.subr.bf16.mxu0 0
        %1486 = vmatpush2.bf16.xpose.msra.mxu0 0
        %1487 = vmatprep.subr.bf16.mxu0 0
        %1488 = vmatpush2.bf16.xpose.msra.mxu0 0
        %1489 = vmatprep.mubr.bf16.mxu0 0
        %1490 = vmatmul.mubr.bf16.gmra.mxu0 %v1452
        %v1491 = vpop.f32.mrf.mxu0
        %v1492 = vadd.f32 0.0, %v1491
        %v1493 = vpop.f32.mrf.mxu0
        %v1494 = vpop.f32.mrf.mxu0
        %v1495 = vpop.f32.mrf.mxu0
        %1496 = vdwg.mxu0
        %v1497 = vsel %vm1400, %v1492, -1000000.0
        %v1498 = vsel %vm718, %v1497, -inf
        %1499 = vmax.xlane.f32.xlu0 %v1498
        %v1500 = vpop.xlane.xlu0 %1499
        %v1501 = vsub.f32 %v1497, %v1500
        %v1502 = vmul.f32 %v1501, 1.442695
        %v1503 = vpow.pop %v1502
        %v1504 = vsel %vm718, %v1503, 0.0
        %1505 = vadd.xlane.f32.xlu0 %v1504
        %v1506 = vpop.xlane.xlu0 %1505
        %v1507 = vrcp.pop %v1506
        %v1508 = vmul.f32 %v1503, %v1507
        %v1509 = vpack.c.bf16 %v1508, %v1508
        %1511 = vrot.lane.b32.xlu0 %v1450, 96
        %v1512 = vpop.permute.xlu0 %1511
        %v1514 = vsel %vm718, %v1509, 0
        %v1517 = vsel %vm782, %v1512, 0
        %1519 = vmatprep.subr.bf16.mxu0 0
        %1520 = vmatpush1.bf16.msra.mxu0 0
        %1521 = vmatprep.subr.bf16.mxu0 0
        %1522 = vmatpush1.bf16.msra.mxu0 0
        %1523 = vmatprep.subr.bf16.mxu0 0
        %1524 = vmatpush1.bf16.msra.mxu0 0
        %1525 = vmatprep.subr.bf16.mxu0 0
        %1526 = vmatpush1.bf16.msra.mxu0 0
        %1527 = vmatprep.subr.bf16.mxu0 0
        %1528 = vmatpush1.bf16.msra.mxu0 0
        %1529 = vmatprep.subr.bf16.mxu0 0
        %1530 = vmatpush1.bf16.msra.mxu0 0
        %1531 = vmatprep.subr.bf16.mxu0 0
        %1532 = vmatpush1.bf16.msra.mxu0 0
        %1533 = vmatprep.subr.bf16.mxu0 0
        %1534 = vmatpush1.bf16.msra.mxu0 %v1517
        %1535 = vmatprep.subr.bf16.mxu0 0
        %1536 = vmatpush2.bf16.msra.mxu0 0
        %1537 = vmatprep.subr.bf16.mxu0 0
        %1538 = vmatpush2.bf16.msra.mxu0 0
        %1539 = vmatprep.subr.bf16.mxu0 0
        %1540 = vmatpush2.bf16.msra.mxu0 0
        %1541 = vmatprep.subr.bf16.mxu0 0
        %1542 = vmatpush2.bf16.msra.mxu0 0
        %1543 = vmatprep.subr.bf16.mxu0 0
        %1544 = vmatpush2.bf16.msra.mxu0 0
        %1545 = vmatprep.subr.bf16.mxu0 0
        %1546 = vmatpush2.bf16.msra.mxu0 0
        %1547 = vmatprep.subr.bf16.mxu0 0
        %1548 = vmatpush2.bf16.msra.mxu0 0
        %1549 = vmatprep.subr.bf16.mxu0 0
        %1550 = vmatpush2.bf16.msra.mxu0 0
        %1551 = vmatprep.mubr.bf16.mxu0 0
        %1552 = vmatmul.mubr.bf16.gmra.mxu0 %v1514
        %v1553 = vpop.f32.mrf.mxu0
        %v1554 = vadd.f32 0.0, %v1553
        %v1555 = vpop.f32.mrf.mxu0
        %v1556 = vpop.f32.mrf.mxu0
        %v1557 = vpop.f32.mrf.mxu0
        %1558 = vdwg.mxu0
        %1560 = vrot.lane.b32.xlu0 %v1449, 120
        %v1561 = vpop.permute.xlu0 %1560
        %1562 = vrot.lane.b32.xlu0 %v1450, 120
        %v1563 = vpop.permute.xlu0 %1562
        %v1565 = vsel %vm718, %v1561, 0
        %v1568 = vsel %vm718, %v1563, 0
        %1570 = vmatprep.subr.bf16.mxu0 0
        %1571 = vmatpush1.bf16.xpose.msra.mxu0 0
        %1572 = vmatprep.subr.bf16.mxu0 0
        %1573 = vmatpush1.bf16.xpose.msra.mxu0 0
        %1574 = vmatprep.subr.bf16.mxu0 0
        %1575 = vmatpush1.bf16.xpose.msra.mxu0 0
        %1576 = vmatprep.subr.bf16.mxu0 0
        %1577 = vmatpush1.bf16.xpose.msra.mxu0 0
        %1578 = vmatprep.subr.bf16.mxu0 0
        %1579 = vmatpush1.bf16.xpose.msra.mxu0 0
        %1580 = vmatprep.subr.bf16.mxu0 0
        %1581 = vmatpush1.bf16.xpose.msra.mxu0 0
        %1582 = vmatprep.subr.bf16.mxu0 0
        %1583 = vmatpush1.bf16.xpose.msra.mxu0 0
        %1584 = vmatprep.subr.bf16.mxu0 0
        %1585 = vmatpush1.bf16.xpose.msra.mxu0 %v1568
        %1586 = vmatprep.subr.bf16.mxu0 0
        %1587 = vmatpush2.bf16.xpose.msra.mxu0 0
        %1588 = vmatprep.subr.bf16.mxu0 0
        %1589 = vmatpush2.bf16.xpose.msra.mxu0 0
        %1590 = vmatprep.subr.bf16.mxu0 0
        %1591 = vmatpush2.bf16.xpose.msra.mxu0 0
        %1592 = vmatprep.subr.bf16.mxu0 0
        %1593 = vmatpush2.bf16.xpose.msra.mxu0 0
        %1594 = vmatprep.subr.bf16.mxu0 0
        %1595 = vmatpush2.bf16.xpose.msra.mxu0 0
        %1596 = vmatprep.subr.bf16.mxu0 0
        %1597 = vmatpush2.bf16.xpose.msra.mxu0 0
        %1598 = vmatprep.subr.bf16.mxu0 0
        %1599 = vmatpush2.bf16.xpose.msra.mxu0 0
        %1600 = vmatprep.subr.bf16.mxu0 0
        %1601 = vmatpush2.bf16.xpose.msra.mxu0 0
        %1602 = vmatprep.mubr.bf16.mxu0 0
        %1603 = vmatmul.mubr.bf16.gmra.mxu0 %v1565
        %v1604 = vpop.f32.mrf.mxu0
        %v1605 = vadd.f32 0.0, %v1604
        %v1606 = vpop.f32.mrf.mxu0
        %v1607 = vpop.f32.mrf.mxu0
        %v1608 = vpop.f32.mrf.mxu0
        %1609 = vdwg.mxu0
        %v1610 = vsel %vm1416, %v1605, -1000000.0
        %v1611 = vsel %vm718, %v1610, -inf
        %1612 = vmax.xlane.f32.xlu0 %v1611
        %v1613 = vpop.xlane.xlu0 %1612
        %v1614 = vsub.f32 %v1610, %v1613
        %v1615 = vmul.f32 %v1614, 1.442695
        %v1616 = vpow.pop %v1615
        %v1617 = vsel %vm718, %v1616, 0.0
        %1618 = vadd.xlane.f32.xlu0 %v1617
        %v1619 = vpop.xlane.xlu0 %1618
        %v1620 = vrcp.pop %v1619
        %v1621 = vmul.f32 %v1616, %v1620
        %v1622 = vpack.c.bf16 %v1621, %v1621
        %1623 = vrot.lane.b32.xlu0 %v1450, 88
        %v1624 = vpop.permute.xlu0 %1623
        %v1626 = vsel %vm718, %v1622, 0
        %v1629 = vsel %vm782, %v1624, 0
        %1631 = vmatprep.subr.bf16.mxu0 0
        %1632 = vmatpush1.bf16.msra.mxu0 0
        %1633 = vmatprep.subr.bf16.mxu0 0
        %1634 = vmatpush1.bf16.msra.mxu0 0
        %1635 = vmatprep.subr.bf16.mxu0 0
        %1636 = vmatpush1.bf16.msra.mxu0 0
        %1637 = vmatprep.subr.bf16.mxu0 0
        %1638 = vmatpush1.bf16.msra.mxu0 0
        %1639 = vmatprep.subr.bf16.mxu0 0
        %1640 = vmatpush1.bf16.msra.mxu0 0
        %1641 = vmatprep.subr.bf16.mxu0 0
        %1642 = vmatpush1.bf16.msra.mxu0 0
        %1643 = vmatprep.subr.bf16.mxu0 0
        %1644 = vmatpush1.bf16.msra.mxu0 0
        %1645 = vmatprep.subr.bf16.mxu0 0
        %1646 = vmatpush1.bf16.msra.mxu0 %v1629
        %1647 = vmatprep.subr.bf16.mxu0 0
        %1648 = vmatpush2.bf16.msra.mxu0 0
        %1649 = vmatprep.subr.bf16.mxu0 0
        %1650 = vmatpush2.bf16.msra.mxu0 0
        %1651 = vmatprep.subr.bf16.mxu0 0
        %1652 = vmatpush2.bf16.msra.mxu0 0
        %1653 = vmatprep.subr.bf16.mxu0 0
        %1654 = vmatpush2.bf16.msra.mxu0 0
        %1655 = vmatprep.subr.bf16.mxu0 0
        %1656 = vmatpush2.bf16.msra.mxu0 0
        %1657 = vmatprep.subr.bf16.mxu0 0
        %1658 = vmatpush2.bf16.msra.mxu0 0
        %1659 = vmatprep.subr.bf16.mxu0 0
        %1660 = vmatpush2.bf16.msra.mxu0 0
        %1661 = vmatprep.subr.bf16.mxu0 0
        %1662 = vmatpush2.bf16.msra.mxu0 0
        %1663 = vmatprep.mubr.bf16.mxu0 0
        %1664 = vmatmul.mubr.bf16.gmra.mxu0 %v1626
        %v1665 = vpop.f32.mrf.mxu0
        %v1666 = vadd.f32 0.0, %v1665
        %v1667 = vpop.f32.mrf.mxu0
        %v1668 = vpop.f32.mrf.mxu0
        %v1669 = vpop.f32.mrf.mxu0
        %1670 = vdwg.mxu0
        %1671 = vrot.lane.b32.xlu0 %v1449, 112
        %v1672 = vpop.permute.xlu0 %1671
        %1673 = vrot.lane.b32.xlu0 %v1450, 112
        %v1674 = vpop.permute.xlu0 %1673
        %v1676 = vsel %vm718, %v1672, 0
        %v1679 = vsel %vm718, %v1674, 0
        %1681 = vmatprep.subr.bf16.mxu0 0
        %1682 = vmatpush1.bf16.xpose.msra.mxu0 0
        %1683 = vmatprep.subr.bf16.mxu0 0
        %1684 = vmatpush1.bf16.xpose.msra.mxu0 0
        %1685 = vmatprep.subr.bf16.mxu0 0
        %1686 = vmatpush1.bf16.xpose.msra.mxu0 0
        %1687 = vmatprep.subr.bf16.mxu0 0
        %1688 = vmatpush1.bf16.xpose.msra.mxu0 0
        %1689 = vmatprep.subr.bf16.mxu0 0
        %1690 = vmatpush1.bf16.xpose.msra.mxu0 0
        %1691 = vmatprep.subr.bf16.mxu0 0
        %1692 = vmatpush1.bf16.xpose.msra.mxu0 0
        %1693 = vmatprep.subr.bf16.mxu0 0
        %1694 = vmatpush1.bf16.xpose.msra.mxu0 0
        %1695 = vmatprep.subr.bf16.mxu0 0
        %1696 = vmatpush1.bf16.xpose.msra.mxu0 %v1679
        %1697 = vmatprep.subr.bf16.mxu0 0
        %1698 = vmatpush2.bf16.xpose.msra.mxu0 0
        %1699 = vmatprep.subr.bf16.mxu0 0
        %1700 = vmatpush2.bf16.xpose.msra.mxu0 0
        %1701 = vmatprep.subr.bf16.mxu0 0
        %1702 = vmatpush2.bf16.xpose.msra.mxu0 0
        %1703 = vmatprep.subr.bf16.mxu0 0
        %1704 = vmatpush2.bf16.xpose.msra.mxu0 0
        %1705 = vmatprep.subr.bf16.mxu0 0
        %1706 = vmatpush2.bf16.xpose.msra.mxu0 0
        %1707 = vmatprep.subr.bf16.mxu0 0
        %1708 = vmatpush2.bf16.xpose.msra.mxu0 0
        %1709 = vmatprep.subr.bf16.mxu0 0
        %1710 = vmatpush2.bf16.xpose.msra.mxu0 0
        %1711 = vmatprep.subr.bf16.mxu0 0
        %1712 = vmatpush2.bf16.xpose.msra.mxu0 0
        %1713 = vmatprep.mubr.bf16.mxu0 0
        %1714 = vmatmul.mubr.bf16.gmra.mxu0 %v1676
        %v1715 = vpop.f32.mrf.mxu0
        %v1716 = vadd.f32 0.0, %v1715
        %v1717 = vpop.f32.mrf.mxu0
        %v1718 = vpop.f32.mrf.mxu0
        %v1719 = vpop.f32.mrf.mxu0
        %1720 = vdwg.mxu0
        %v1721 = vsel %vm1432, %v1716, -1000000.0
        %v1722 = vsel %vm718, %v1721, -inf
        %1723 = vmax.xlane.f32.xlu0 %v1722
        %v1724 = vpop.xlane.xlu0 %1723
        %v1725 = vsub.f32 %v1721, %v1724
        %v1726 = vmul.f32 %v1725, 1.442695
        %v1727 = vpow.pop %v1726
        %v1728 = vsel %vm718, %v1727, 0.0
        %1729 = vadd.xlane.f32.xlu0 %v1728
        %v1730 = vpop.xlane.xlu0 %1729
        %v1731 = vrcp.pop %v1730
        %v1732 = vmul.f32 %v1727, %v1731
        %v1733 = vpack.c.bf16 %v1732, %v1732
        %1734 = vrot.lane.b32.xlu0 %v1450, 80
        %v1735 = vpop.permute.xlu0 %1734
        %v1737 = vsel %vm718, %v1733, 0
        %v1740 = vsel %vm782, %v1735, 0
        %1742 = vmatprep.subr.bf16.mxu0 0
        %1743 = vmatpush1.bf16.msra.mxu0 0
        %1744 = vmatprep.subr.bf16.mxu0 0
        %1745 = vmatpush1.bf16.msra.mxu0 0
        %1746 = vmatprep.subr.bf16.mxu0 0
        %1747 = vmatpush1.bf16.msra.mxu0 0
        %1748 = vmatprep.subr.bf16.mxu0 0
        %1749 = vmatpush1.bf16.msra.mxu0 0
        %1750 = vmatprep.subr.bf16.mxu0 0
        %1751 = vmatpush1.bf16.msra.mxu0 0
        %1752 = vmatprep.subr.bf16.mxu0 0
        %1753 = vmatpush1.bf16.msra.mxu0 0
        %1754 = vmatprep.subr.bf16.mxu0 0
        %1755 = vmatpush1.bf16.msra.mxu0 0
        %1756 = vmatprep.subr.bf16.mxu0 0
        %1757 = vmatpush1.bf16.msra.mxu0 %v1740
        %1758 = vmatprep.subr.bf16.mxu0 0
        %1759 = vmatpush2.bf16.msra.mxu0 0
        %1760 = vmatprep.subr.bf16.mxu0 0
        %1761 = vmatpush2.bf16.msra.mxu0 0
        %1762 = vmatprep.subr.bf16.mxu0 0
        %1763 = vmatpush2.bf16.msra.mxu0 0
        %1764 = vmatprep.subr.bf16.mxu0 0
        %1765 = vmatpush2.bf16.msra.mxu0 0
        %1766 = vmatprep.subr.bf16.mxu0 0
        %1767 = vmatpush2.bf16.msra.mxu0 0
        %1768 = vmatprep.subr.bf16.mxu0 0
        %1769 = vmatpush2.bf16.msra.mxu0 0
        %1770 = vmatprep.subr.bf16.mxu0 0
        %1771 = vmatpush2.bf16.msra.mxu0 0
        %1772 = vmatprep.subr.bf16.mxu0 0
        %1773 = vmatpush2.bf16.msra.mxu0 0
        %1774 = vmatprep.mubr.bf16.mxu0 0
        %1775 = vmatmul.mubr.bf16.gmra.mxu0 %v1737
        %v1776 = vpop.f32.mrf.mxu0
        %v1777 = vadd.f32 0.0, %v1776
        %v1778 = vpop.f32.mrf.mxu0
        %v1779 = vpop.f32.mrf.mxu0
        %v1780 = vpop.f32.mrf.mxu0
        %1781 = vdwg.mxu0
        %1782 = vrot.lane.b32.xlu0 %v1449, 104
        %v1783 = vpop.permute.xlu0 %1782
        %1784 = vrot.lane.b32.xlu0 %v1450, 104
        %v1785 = vpop.permute.xlu0 %1784
        %v1787 = vsel %vm718, %v1783, 0
        %v1790 = vsel %vm718, %v1785, 0
        %1792 = vmatprep.subr.bf16.mxu0 0
        %1793 = vmatpush1.bf16.xpose.msra.mxu0 0
        %1794 = vmatprep.subr.bf16.mxu0 0
        %1795 = vmatpush1.bf16.xpose.msra.mxu0 0
        %1796 = vmatprep.subr.bf16.mxu0 0
        %1797 = vmatpush1.bf16.xpose.msra.mxu0 0
        %1798 = vmatprep.subr.bf16.mxu0 0
        %1799 = vmatpush1.bf16.xpose.msra.mxu0 0
        %1800 = vmatprep.subr.bf16.mxu0 0
        %1801 = vmatpush1.bf16.xpose.msra.mxu0 0
        %1802 = vmatprep.subr.bf16.mxu0 0
        %1803 = vmatpush1.bf16.xpose.msra.mxu0 0
        %1804 = vmatprep.subr.bf16.mxu0 0
        %1805 = vmatpush1.bf16.xpose.msra.mxu0 0
        %1806 = vmatprep.subr.bf16.mxu0 0
        %1807 = vmatpush1.bf16.xpose.msra.mxu0 %v1790
        %1808 = vmatprep.subr.bf16.mxu0 0
        %1809 = vmatpush2.bf16.xpose.msra.mxu0 0
        %1810 = vmatprep.subr.bf16.mxu0 0
        %1811 = vmatpush2.bf16.xpose.msra.mxu0 0
        %1812 = vmatprep.subr.bf16.mxu0 0
        %1813 = vmatpush2.bf16.xpose.msra.mxu0 0
        %1814 = vmatprep.subr.bf16.mxu0 0
        %1815 = vmatpush2.bf16.xpose.msra.mxu0 0
        %1816 = vmatprep.subr.bf16.mxu0 0
        %1817 = vmatpush2.bf16.xpose.msra.mxu0 0
        %1818 = vmatprep.subr.bf16.mxu0 0
        %1819 = vmatpush2.bf16.xpose.msra.mxu0 0
        %1820 = vmatprep.subr.bf16.mxu0 0
        %1821 = vmatpush2.bf16.xpose.msra.mxu0 0
        %1822 = vmatprep.subr.bf16.mxu0 0
        %1823 = vmatpush2.bf16.xpose.msra.mxu0 0
        %1824 = vmatprep.mubr.bf16.mxu0 0
        %1825 = vmatmul.mubr.bf16.gmra.mxu0 %v1787
        %v1826 = vpop.f32.mrf.mxu0
        %v1827 = vadd.f32 0.0, %v1826
        %v1828 = vpop.f32.mrf.mxu0
        %v1829 = vpop.f32.mrf.mxu0
        %v1830 = vpop.f32.mrf.mxu0
        %1831 = vdwg.mxu0
        %v1832 = vsel %vm1448, %v1827, -1000000.0
        %v1833 = vsel %vm718, %v1832, -inf
        %1834 = vmax.xlane.f32.xlu0 %v1833
        %v1835 = vpop.xlane.xlu0 %1834
        %v1836 = vsub.f32 %v1832, %v1835
        %v1837 = vmul.f32 %v1836, 1.442695
        %v1838 = vpow.pop %v1837
        %v1839 = vsel %vm718, %v1838, 0.0
        %1840 = vadd.xlane.f32.xlu0 %v1839
        %v1841 = vpop.xlane.xlu0 %1840
        %v1842 = vrcp.pop %v1841
        %v1843 = vmul.f32 %v1838, %v1842
        %v1844 = vpack.c.bf16 %v1843, %v1843
        %1845 = vrot.lane.b32.xlu0 %v1450, 72
        %v1846 = vpop.permute.xlu0 %1845
        %v1848 = vsel %vm718, %v1844, 0
        %v1851 = vsel %vm782, %v1846, 0
        %1853 = vmatprep.subr.bf16.mxu0 0
        %1854 = vmatpush1.bf16.msra.mxu0 0
        %1855 = vmatprep.subr.bf16.mxu0 0
        %1856 = vmatpush1.bf16.msra.mxu0 0
        %1857 = vmatprep.subr.bf16.mxu0 0
        %1858 = vmatpush1.bf16.msra.mxu0 0
        %1859 = vmatprep.subr.bf16.mxu0 0
        %1860 = vmatpush1.bf16.msra.mxu0 0
        %1861 = vmatprep.subr.bf16.mxu0 0
        %1862 = vmatpush1.bf16.msra.mxu0 0
        %1863 = vmatprep.subr.bf16.mxu0 0
        %1864 = vmatpush1.bf16.msra.mxu0 0
        %1865 = vmatprep.subr.bf16.mxu0 0
        %1866 = vmatpush1.bf16.msra.mxu0 0
        %1867 = vmatprep.subr.bf16.mxu0 0
        %1868 = vmatpush1.bf16.msra.mxu0 %v1851
        %1869 = vmatprep.subr.bf16.mxu0 0
        %1870 = vmatpush2.bf16.msra.mxu0 0
        %1871 = vmatprep.subr.bf16.mxu0 0
        %1872 = vmatpush2.bf16.msra.mxu0 0
        %1873 = vmatprep.subr.bf16.mxu0 0
        %1874 = vmatpush2.bf16.msra.mxu0 0
        %1875 = vmatprep.subr.bf16.mxu0 0
        %1876 = vmatpush2.bf16.msra.mxu0 0
        %1877 = vmatprep.subr.bf16.mxu0 0
        %1878 = vmatpush2.bf16.msra.mxu0 0
        %1879 = vmatprep.subr.bf16.mxu0 0
        %1880 = vmatpush2.bf16.msra.mxu0 0
        %1881 = vmatprep.subr.bf16.mxu0 0
        %1882 = vmatpush2.bf16.msra.mxu0 0
        %1883 = vmatprep.subr.bf16.mxu0 0
        %1884 = vmatpush2.bf16.msra.mxu0 0
        %1885 = vmatprep.mubr.bf16.mxu0 0
        %1886 = vmatmul.mubr.bf16.gmra.mxu0 %v1848
        %v1887 = vpop.f32.mrf.mxu0
        %v1888 = vadd.f32 0.0, %v1887
        %v1889 = vpop.f32.mrf.mxu0
        %v1890 = vpop.f32.mrf.mxu0
        %v1891 = vpop.f32.mrf.mxu0
        %1892 = vdwg.mxu0
        %1894 = vrot.lane.b32.xlu0 %v1666, 8
        %v1895 = vpop.permute.xlu0 %1894
        %1898 = vrot.lane.b32.xlu0 %v1777, 16
        %v1899 = vpop.permute.xlu0 %1898
        %1902 = vrot.lane.b32.xlu0 %v1888, 24
        %v1903 = vpop.permute.xlu0 %1902
        %v1905 = vsel %vm718, %v1554, %v1895
        %v1906 = vsel %vm1169, %v1905, %v1899
        %v1907 = vsel %vm1171, %v1906, %v1903
        %v1908 = vpack.c.bf16 %v1907, %v1907
        %v1909 = vld [vmem:[#allocation10] sm:$0xf]
        %v1910 = vld [vmem:[#allocation10 + $0x4] sm:$0xf]
        %v1911 = vld [vmem:[#allocation10 + $0x8] sm:$0xf]
        %v1912 = vld [vmem:[#allocation10 + $0xc] sm:$0xf]
        %v1917 = vunpack.c.l.b16 %v1909
        %v1918 = vunpack.c.l.b16 %v1910
        %v1919 = vunpack.c.l.b16 %v1911
        %v1920 = vunpack.c.l.b16 %v1912
        %v1921 = vpack.c.b16 %v1918, %v1917
        %v1922 = vpack.c.b16 %v1920, %v1919
        %v1926 = vsel %vm670, %v1908, 0
        %1928 = vmatprep.subr.bf16.mxu0 0
        %1929 = vmatpush1.bf16.msra.mxu0 0
        %1930 = vmatprep.subr.bf16.mxu0 0
        %1931 = vmatpush1.bf16.msra.mxu0 0
        %1932 = vmatprep.subr.bf16.mxu0 0
        %1933 = vmatpush1.bf16.msra.mxu0 0
        %1934 = vmatprep.subr.bf16.mxu0 0
        %1935 = vmatpush1.bf16.msra.mxu0 0
        %1936 = vmatprep.subr.bf16.mxu0 0
        %1937 = vmatpush1.bf16.msra.mxu0 0
        %1938 = vmatprep.subr.bf16.mxu0 0
        %1939 = vmatpush1.bf16.msra.mxu0 0
        %1940 = vmatprep.subr.bf16.mxu0 0
        %1941 = vmatpush1.bf16.msra.mxu0 %v1922
        %1942 = vmatprep.subr.bf16.mxu0 0
        %1943 = vmatpush1.bf16.msra.mxu0 %v1921
        %1944 = vmatprep.subr.bf16.mxu0 0
        %1945 = vmatpush2.bf16.msra.mxu0 0
        %1946 = vmatprep.subr.bf16.mxu0 0
        %1947 = vmatpush2.bf16.msra.mxu0 0
        %1948 = vmatprep.subr.bf16.mxu0 0
        %1949 = vmatpush2.bf16.msra.mxu0 0
        %1950 = vmatprep.subr.bf16.mxu0 0
        %1951 = vmatpush2.bf16.msra.mxu0 0
        %1952 = vmatprep.subr.bf16.mxu0 0
        %1953 = vmatpush2.bf16.msra.mxu0 0
        %1954 = vmatprep.subr.bf16.mxu0 0
        %1955 = vmatpush2.bf16.msra.mxu0 0
        %1956 = vmatprep.subr.bf16.mxu0 0
        %1957 = vmatpush2.bf16.msra.mxu0 0
        %1958 = vmatprep.subr.bf16.mxu0 0
        %1959 = vmatpush2.bf16.msra.mxu0 0
        %1960 = vmatprep.mubr.bf16.mxu0 0
        %1961 = vmatmul.mubr.bf16.gmra.mxu0 %v1926
        %v1962 = vpop.f32.mrf.mxu0
        %v1963 = vadd.f32 %v1262, %v1962
        %v1964 = vpop.f32.mrf.mxu0
        %v1965 = vpop.f32.mrf.mxu0
        %v1966 = vpop.f32.mrf.mxu0
        %1967 = vdwg.mxu0
        %v1968 = vsel %vm670, %v1963, 0.0
        %1969 = vadd.xlane.f32.xlu0 %v1968
        %v1970 = vpop.xlane.xlu0 %1969
        %v1971 = vmul.f32 %v1970, %v1236
        %v1972 = vsub.f32 %v1963, %v1971
        %v1973 = vmul.f32 %v1972, %v1972
        %v1974 = vsel %vm670, %v1973, 0.0
        %1975 = vadd.xlane.f32.xlu0 %v1974
        %v1976 = vpop.xlane.xlu0 %1975
        %v1977 = vmul.f32 %v1976, %v1236
        %v1978 = vadd.f32 %v1977, 1e-05
        %v1979 = vrsqrt.pop %v1978
        %v1980 = vmul.f32 %v1972, %v1979
        %v1981 = vld [vmem:[%s10] sm:$0x1]
        %v1983 = vlaneseq
        %v1984 = vshrl.u32 %v1983, 7
        %v1985 = vsub.s32 0, %v1984
        %v1986 = vrot.slane %v1981, %v1985
        %v1988 = vmul.f32 %v1980, %v1986
        %v1989 = vld [vmem:[%s11] sm:$0x1]
        %v1991 = vlaneseq
        %v1992 = vshrl.u32 %v1991, 7
        %v1993 = vsub.s32 0, %v1992
        %v1994 = vrot.slane %v1989, %v1993
        %v1996 = vadd.f32 %v1988, %v1994
        %v1997 = vpack.c.bf16 %v1996, %v1996
        %v1998 = vld [vmem:[%s14] sm:$0xf]
        %v1999 = vld [vmem:[%s14 + $0x4] sm:$0xf]
        %v2000 = vld [vmem:[%s14 + $0x8] sm:$0xf]
        %v2001 = vld [vmem:[%s14 + $0xc] sm:$0xf]
        %v2002 = vld [vmem:[%s15] sm:$0x1]
        %v2004 = vlaneseq
        %v2005 = vshrl.u32 %v2004, 7
        %v2006 = vsub.s32 0, %v2005
        %v2007 = vrot.slane %v2002, %v2006
        %v2013 = vunpack.c.l.b16 %v1998
        %v2014 = vunpack.c.l.b16 %v1999
        %v2015 = vunpack.c.l.b16 %v2000
        %v2016 = vunpack.c.l.b16 %v2001
        %v2017 = vpack.c.b16 %v2014, %v2013
        %v2018 = vpack.c.b16 %v2016, %v2015
        %v2022 = vsel %vm670, %v1997, 0
        %2024 = vmatprep.subr.bf16.mxu0 0
        %2025 = vmatpush1.bf16.msra.mxu0 0
        %2026 = vmatprep.subr.bf16.mxu0 0
        %2027 = vmatpush1.bf16.msra.mxu0 0
        %2028 = vmatprep.subr.bf16.mxu0 0
        %2029 = vmatpush1.bf16.msra.mxu0 0
        %2030 = vmatprep.subr.bf16.mxu0 0
        %2031 = vmatpush1.bf16.msra.mxu0 0
        %2032 = vmatprep.subr.bf16.mxu0 0
        %2033 = vmatpush1.bf16.msra.mxu0 0
        %2034 = vmatprep.subr.bf16.mxu0 0
        %2035 = vmatpush1.bf16.msra.mxu0 0
        %2036 = vmatprep.subr.bf16.mxu0 0
        %2037 = vmatpush1.bf16.msra.mxu0 %v2018
        %2038 = vmatprep.subr.bf16.mxu0 0
        %2039 = vmatpush1.bf16.msra.mxu0 %v2017
        %2040 = vmatprep.subr.bf16.mxu0 0
        %2041 = vmatpush2.bf16.msra.mxu0 0
        %2042 = vmatprep.subr.bf16.mxu0 0
        %2043 = vmatpush2.bf16.msra.mxu0 0
        %2044 = vmatprep.subr.bf16.mxu0 0
        %2045 = vmatpush2.bf16.msra.mxu0 0
        %2046 = vmatprep.subr.bf16.mxu0 0
        %2047 = vmatpush2.bf16.msra.mxu0 0
        %2048 = vmatprep.subr.bf16.mxu0 0
        %2049 = vmatpush2.bf16.msra.mxu0 0
        %2050 = vmatprep.subr.bf16.mxu0 0
        %2051 = vmatpush2.bf16.msra.mxu0 0
        %2052 = vmatprep.subr.bf16.mxu0 0
        %2053 = vmatpush2.bf16.msra.mxu0 0
        %2054 = vmatprep.subr.bf16.mxu0 0
        %2055 = vmatpush2.bf16.msra.mxu0 0
        %2056 = vmatprep.mubr.bf16.mxu0 0
        %2057 = vmatmul.mubr.bf16.gmra.mxu0 %v2022
        %v2058 = vpop.f32.mrf.mxu0
        %v2059 = vadd.f32 %v2007, %v2058
        %v2060 = vpop.f32.mrf.mxu0
        %v2061 = vpop.f32.mrf.mxu0
        %v2062 = vpop.f32.mrf.mxu0
        %2063 = vdwg.mxu0
        %v2064 = vmax.f32 %v2059, 0.0
        %v2065 = vpack.c.bf16 %v2064, %v2064
        %v2066 = vld [vmem:[%s16] sm:$0xf]
        %v2067 = vld [vmem:[%s16 + $0x4] sm:$0xf]
        %v2068 = vld [vmem:[%s16 + $0x8] sm:$0xf]
        %v2069 = vld [vmem:[%s16 + $0xc] sm:$0xf]
        %v2070 = vld [vmem:[%s16 + $0x10] sm:$0xf]
        %v2071 = vld [vmem:[%s16 + $0x14] sm:$0xf]
        %v2072 = vld [vmem:[%s16 + $0x18] sm:$0xf]
        %v2073 = vld [vmem:[%s16 + $0x1c] sm:$0xf]
        %v2074 = vld [vmem:[%s17] sm:$0x1]
        %v2076 = vlaneseq
        %v2077 = vshrl.u32 %v2076, 7
        %v2078 = vsub.s32 0, %v2077
        %v2079 = vrot.slane %v2074, %v2078
        %v2089 = vunpack.c.l.b16 %v2066
        %v2090 = vunpack.c.l.b16 %v2067
        %v2091 = vunpack.c.l.b16 %v2068
        %v2092 = vunpack.c.l.b16 %v2069
        %v2093 = vunpack.c.l.b16 %v2070
        %v2094 = vunpack.c.l.b16 %v2071
        %v2095 = vunpack.c.l.b16 %v2072
        %v2096 = vunpack.c.l.b16 %v2073
        %v2097 = vpack.c.b16 %v2090, %v2089
        %v2098 = vpack.c.b16 %v2092, %v2091
        %v2099 = vpack.c.b16 %v2094, %v2093
        %v2100 = vpack.c.b16 %v2096, %v2095
        %vm2105 = vcmask 523264
        %v2107 = vsel %vm2105, %v2065, 0
        %2109 = vmatprep.subr.bf16.mxu0 0
        %2110 = vmatpush1.bf16.msra.mxu0 0
        %2111 = vmatprep.subr.bf16.mxu0 0
        %2112 = vmatpush1.bf16.msra.mxu0 0
        %2113 = vmatprep.subr.bf16.mxu0 0
        %2114 = vmatpush1.bf16.msra.mxu0 0
        %2115 = vmatprep.subr.bf16.mxu0 0
        %2116 = vmatpush1.bf16.msra.mxu0 0
        %2117 = vmatprep.subr.bf16.mxu0 0
        %2118 = vmatpush1.bf16.msra.mxu0 %v2100
        %2119 = vmatprep.subr.bf16.mxu0 0
        %2120 = vmatpush1.bf16.msra.mxu0 %v2099
        %2121 = vmatprep.subr.bf16.mxu0 0
        %2122 = vmatpush1.bf16.msra.mxu0 %v2098
        %2123 = vmatprep.subr.bf16.mxu0 0
        %2124 = vmatpush1.bf16.msra.mxu0 %v2097
        %2125 = vmatprep.subr.bf16.mxu0 0
        %2126 = vmatpush2.bf16.msra.mxu0 0
        %2127 = vmatprep.subr.bf16.mxu0 0
        %2128 = vmatpush2.bf16.msra.mxu0 0
        %2129 = vmatprep.subr.bf16.mxu0 0
        %2130 = vmatpush2.bf16.msra.mxu0 0
        %2131 = vmatprep.subr.bf16.mxu0 0
        %2132 = vmatpush2.bf16.msra.mxu0 0
        %2133 = vmatprep.subr.bf16.mxu0 0
        %2134 = vmatpush2.bf16.msra.mxu0 0
        %2135 = vmatprep.subr.bf16.mxu0 0
        %2136 = vmatpush2.bf16.msra.mxu0 0
        %2137 = vmatprep.subr.bf16.mxu0 0
        %2138 = vmatpush2.bf16.msra.mxu0 0
        %2139 = vmatprep.subr.bf16.mxu0 0
        %2140 = vmatpush2.bf16.msra.mxu0 0
        %2141 = vmatprep.mubr.bf16.mxu0 0
        %2142 = vmatmul.mubr.bf16.gmra.mxu0 %v2107
        %v2143 = vpop.f32.mrf.mxu0
        %v2144 = vadd.f32 %v2079, %v2143
        %v2145 = vpop.f32.mrf.mxu0
        %v2146 = vpop.f32.mrf.mxu0
        %v2147 = vpop.f32.mrf.mxu0
        %2148 = vdwg.mxu0
        %v2149 = vadd.f32 %v2144, %v1996
        %v2150 = vsel %vm670, %v2149, 0.0
        %2151 = vadd.xlane.f32.xlu0 %v2150
        %v2152 = vpop.xlane.xlu0 %2151
        %v2153 = vmul.f32 %v2152, %v1236
        %v2154 = vsub.f32 %v2149, %v2153
        %v2155 = vmul.f32 %v2154, %v2154
        %v2156 = vsel %vm670, %v2155, 0.0
        %2157 = vadd.xlane.f32.xlu0 %v2156
        %v2158 = vpop.xlane.xlu0 %2157
        %v2159 = vmul.f32 %v2158, %v1236
        %v2160 = vadd.f32 %v2159, 1e-05
        %v2161 = vrsqrt.pop %v2160
        %v2162 = vmul.f32 %v2154, %v2161
        %v2163 = vld [vmem:[%s12] sm:$0x1]
        %v2165 = vlaneseq
        %v2166 = vshrl.u32 %v2165, 7
        %v2167 = vsub.s32 0, %v2166
        %v2168 = vrot.slane %v2163, %v2167
        %v2170 = vmul.f32 %v2162, %v2168
        %v2171 = vld [vmem:[%s13] sm:$0x1]
        %v2173 = vlaneseq
        %v2174 = vshrl.u32 %v2173, 7
        %v2175 = vsub.s32 0, %v2174
        %v2176 = vrot.slane %v2171, %v2175
        %v2178 = vadd.f32 %v2170, %v2176
        %2179 = vst.msk [vmem:[%s641] sm:$0xff] %vm670, %v2178
        %s2180 = sand.u32 %s415, 1
        %s2181 = scalar_lea.sflag [#allocation6], %s2180
        %s2182 = sand.u32 %s415, 1
        %s2183 = smul.addr %s2182, 8
        %s2184 = scalar_lea.vmem [#allocation15], %s2183
        // Predicated region
        $region113: #{tpu_custom_call.1} parent=87 // pred_check
          %p2185 = pneg %p425
        $region114: #{tpu_custom_call.1} parent=87 // pred_check_branch
          %2187 = sbr.rel (%p2185) target = $region116
        $region115: #{tpu_custom_call.1} parent=87 // pred_region
          %s2189 = ssub.s32 128, 128
          %2190 = vsyncadd %s2181, %s2189
          %s2191 = smul.addr %s40, 128
          %s2192 = scalar_lea.hbm %s18, %s2191
          %s2194 = sshll.u32 %s2184, 4
          %s2195 = int_to_ptr.vmem [resolvable:$true] %s2194
          %2197 = dma.vmem_to_hbm [thread:$0]  %s2195, 128, %s2192, %s2181
        $region116: #{tpu_custom_call.1} parent=87 // pred_fallthru
          _
      $region88: #{tpu_custom_call.1} parent=5 // pred_fallthru
        _
      %p2198 = scmp.le.s32.totalorder 2, %s35
      // Predicated region
      $region117: #{tpu_custom_call.1} parent=5 // pred_check
        %p2199 = pneg %p2198
      $region118: #{tpu_custom_call.1} parent=5 // pred_check_branch
        %2201 = sbr.rel (%p2199) target = $region120
      $region119: #{tpu_custom_call.1} parent=5 // pred_region
        %s2202 = ssub.s32 %s35, 2
        // Predicated region
        $region121: #{tpu_custom_call.1} parent=119 // pred_check
          %p2203 = pneg %p431
        $region122: #{tpu_custom_call.1} parent=119 // pred_check_branch
          %2205 = sbr.rel (%p2203) target = $region124
        $region123: #{tpu_custom_call.1} parent=119 // pred_region
          %s2206 = sand.u32 %s416, 1
          %s2207 = scalar_lea.sflag [#allocation6], %s2206
          %s2208 = sand.u32 %s416, 1
          %s2209 = smul.addr %s2208, 8
          %s2210 = scalar_lea.vmem [#allocation15], %s2209
          %2211 = dma.done %s2207, 128
        $region124: #{tpu_custom_call.1} parent=119 // pred_fallthru
          _
      $region120: #{tpu_custom_call.1} parent=5 // pred_fallthru
        _
    $region6: #{tpu_custom_call.1} parent=1 // loop_footer
      %s39 = sadd.s32 1, %s35
    $region7: #{tpu_custom_call.1} parent=1 // loop_footer_branch
      %34 = sbr.rel target = $region3
    $region8: #{tpu_custom_call.1} parent=1 // loop_exit
      _
    %2212 = vsyncpa [#allocation5], 1
    %s2213 = scalar_lea.sflag [#allocation5], 1
    %2214 = vsyncpa %s2213, 1
    %2215 = vsyncpa [#allocation8], 1
    %2216 = vsyncpa [#allocation11], 1
    %2217 = vsyncpa [#allocation14], 1
    %2218 = vsyncpa [#allocation6], 1
    %s2219 = scalar_lea.sflag [#allocation6], 1
    %2220 = vsyncpa %s2219, 1

</llo_original>
